<compile_context>
chip_gen: v7x
topology: tpu7x:2x2x1
jax: 0.10.0
libtpu: 0.0.40
codegen_flags: <defaults>
</compile_context>

<pallas_src>
import jax
import jax.numpy as jnp
from jax.experimental import pallas as pl
from jax.experimental.pallas import tpu as pltpu

# Full-f32 matmul precision for both the kernel and the pure-JAX reference so the
# numerical comparison is apples-to-apples.
jax.config.update("jax_default_matmul_precision", "highest")

LANE = 128     # vreg lane width     -> last-dim granularity
SUBLANE = 8    # vreg sublane width  -> second-to-last-dim granularity


def _round_up(x, m):
    return ((x + m - 1) // m) * m


def nonlocal_kernel(q_ref, p_ref, wp_ref, bp_ref, out_ref):
    """One batch tile of: out = query + part @ Wp_T + bp."""
    # q_ref / p_ref / out_ref: (tb, Dp); wp_ref: (Dp, Dp); bp_ref: (1, Dp)
    f_part = jnp.dot(p_ref[...], wp_ref[...], preferred_element_type=jnp.float32)
    out_ref[...] = (
        q_ref[...].astype(jnp.float32) + f_part + bp_ref[...].astype(jnp.float32)
    ).astype(out_ref.dtype)


def prepare_nonlocal_params(wp, bp):
    """One-time parameter prep (do at load time, NOT per forward call).

    Transposes the torch-layout (out, in) Linear weight to (in, out) and zero-pads
    the feature axes up to a multiple of 128 so the kernel sees lane-dense tiles.
    """
    d_out, d_in = wp.shape
    dp_in = _round_up(d_in, LANE)
    dp_out = _round_up(d_out, LANE)
    wp_t = jnp.zeros((dp_in, dp_out), wp.dtype).at[:d_in, :d_out].set(wp.T)
    bp_p = jnp.zeros((1, dp_out), bp.dtype).at[0, :d_out].set(bp)
    return wp_t, bp_p


def nonlocal_forward(query, part, wp_t, bp_p, *, block_b=128):
    """query, part: (B, D).  wp_t/bp_p: outputs of prepare_nonlocal_params."""
    B, D = query.shape
    Dp = wp_t.shape[1]

    # Batch tile: sublane-aligned, up to block_b rows per grid step.
    tb = block_b if B >= block_b else _round_up(B, SUBLANE)
    Bp = _round_up(B, tb)

    needs_pad = (Bp, Dp) != (B, D)
    if needs_pad:
        q_in = jnp.zeros((Bp, Dp), query.dtype).at[:B, :D].set(query)
        p_in = jnp.zeros((Bp, Dp), part.dtype).at[:B, :D].set(part)
    else:
        q_in, p_in = query, part

    # TODO(synk): for in_dim >= ~2048 (f32 weight >= 16 MiB) switch to a (batch, K)
    # grid with a K-reduction + f32 VMEM accumulator so the weight working set fits
    # v7x's 64 MiB VMEM; full-weight residency is fine at torchreid feature sizes.
    out = pl.pallas_call(
        nonlocal_kernel,
        out_shape=jax.ShapeDtypeStruct((Bp, Dp), query.dtype),
        grid=(Bp // tb,),
        in_specs=[
            pl.BlockSpec((tb, Dp), lambda i: (i, 0)),   # query tile (streamed)
            pl.BlockSpec((tb, Dp), lambda i: (i, 0)),   # part tile  (streamed)
            pl.BlockSpec((Dp, Dp), lambda i: (0, 0)),   # weight: constant block -> resident
            pl.BlockSpec((1, Dp), lambda i: (0, 0)),    # bias:   constant block -> resident
        ],
        out_specs=pl.BlockSpec((tb, Dp), lambda i: (i, 0)),
        input_output_aliases={0: 0},                    # out overwrites the query buffer
        compiler_params=pltpu.CompilerParams(
            dimension_semantics=("parallel",),          # shard batch tiles across TCs (v7x)
        ),
    )(q_in, p_in, wp_t, bp_p)

    if needs_pad:
        out = out[:B, :D]
    return out


def nonlocal_reference(query, part, wq, bq, wp, bp, wv, bv):
    """Pure-JAX replica of the full PyTorch forward (including its dead branches)."""
    f_query = (query @ wq.T + bq)[:, None, :]           # (B, 1, D)
    f_part = (part @ wp.T + bp)[:, :, None]             # (B, D, 1)
    f_value = (part @ wv.T + bv)[:, :, None]            # overwritten below (dead)
    del f_value
    energy = jnp.matmul(f_query, f_part)                # (B, 1, 1)
    similarity = jax.nn.softmax(energy, axis=-1)        # softmax over singleton == 1
    f_value = jnp.matmul(f_part, similarity)            # (B, D, 1)
    final_feat = query[:, :, None] + f_value
    return final_feat[:, :, 0]


if __name__ == "__main__":
    def run_case(key, B, D):
        ks = jax.random.split(key, 8)
        query = jax.random.normal(ks[0], (B, D), dtype=jnp.float32)
        part = jax.random.normal(ks[1], (B, D), dtype=jnp.float32)

        scale = 1.0 / (D ** 0.5)   # torch nn.Linear default init range
        wq = jax.random.uniform(ks[2], (D, D), minval=-scale, maxval=scale, dtype=jnp.float32)
        bq = jax.random.uniform(ks[3], (D,), minval=-scale, maxval=scale, dtype=jnp.float32)
        wp = jax.random.uniform(ks[4], (D, D), minval=-scale, maxval=scale, dtype=jnp.float32)
        bp = jax.random.uniform(ks[5], (D,), minval=-scale, maxval=scale, dtype=jnp.float32)
        wv = jax.random.uniform(ks[6], (D, D), minval=-scale, maxval=scale, dtype=jnp.float32)
        bv = jax.random.uniform(ks[7], (D,), minval=-scale, maxval=scale, dtype=jnp.float32)

        ref = jax.block_until_ready(
            nonlocal_reference(query, part, wq, bq, wp, bp, wv, bv))

        wp_t, bp_p = prepare_nonlocal_params(wp, bp)    # one-time param prep
        out = jax.block_until_ready(nonlocal_forward(query, part, wp_t, bp_p))

        assert out.shape == (B, D), (out.shape, (B, D))
        assert jnp.allclose(out, ref, atol=1e-4, rtol=1e-4), f"mismatch at B={B}, D={D}"

    root = jax.random.PRNGKey(0)
    k0, k1 = jax.random.split(root)
    run_case(k0, B=256, D=32)    # non-lane-aligned features -> padded path, 2 grid steps
    run_case(k1, B=16, D=128)    # already lane-dense        -> no-pad path
    print("KERNEL_OK")
</pallas_src>

<mosaic_0001>
module attributes {stable_mosaic.version = 11 : i64} {
  func.func @nonlocal_kernel(%arg0: i32, %arg1: memref<128x128xf32, #tpu.memory_space<vmem>>, %arg2: memref<128x128xf32, #tpu.memory_space<vmem>>, %arg3: memref<128x128xf32, #tpu.memory_space<vmem>>, %arg4: memref<1x128xf32, #tpu.memory_space<vmem>>, %arg5: memref<128x128xf32, #tpu.memory_space<vmem>>) attributes {dimension_semantics = [#tpu.dimension_semantics<parallel>], iteration_bounds = array<i64: 2>, scalar_prefetch = 0 : i64, scratch_operands = 0 : i64, tpu.core_type = #tpu.core_type<tc>, window_params = [{transform_indices = @transform_0, window_bounds = array<i64: 128, 128>}, {transform_indices = @transform_1, window_bounds = array<i64: 128, 128>}, {pipeline_mode = #tpu.pipeline_mode<synchronous>, transform_indices = @transform_2, window_bounds = array<i64: 128, 128>}, {pipeline_mode = #tpu.pipeline_mode<synchronous>, transform_indices = @transform_3, window_bounds = array<i64: 1, 128>}, {transform_indices = @transform_4, window_bounds = array<i64: 128, 128>}]} {
    %c0 = arith.constant 0 : index
    %c0_0 = arith.constant 0 : index
    %0 = vector.load %arg2[%c0, %c0_0] : memref<128x128xf32, #tpu.memory_space<vmem>>, vector<128x128xf32>
    %c0_1 = arith.constant 0 : index
    %c0_2 = arith.constant 0 : index
    %1 = vector.load %arg3[%c0_1, %c0_2] : memref<128x128xf32, #tpu.memory_space<vmem>>, vector<128x128xf32>
    %cst = arith.constant dense<0.000000e+00> : vector<128x128xf32>
    %2 = tpu.matmul %0, %1, %cst {dimension_numbers = #tpu.dot_dimension_numbers<[1], [0], [0], [1], [0, 0, 1, 1], [], []>, precision = #tpu.contract_precision<fp32>} : vector<128x128xf32>, vector<128x128xf32>, vector<128x128xf32> -> vector<128x128xf32>
    %c0_3 = arith.constant 0 : index
    %c0_4 = arith.constant 0 : index
    %3 = vector.load %arg1[%c0_3, %c0_4] : memref<128x128xf32, #tpu.memory_space<vmem>>, vector<128x128xf32>
    %4 = arith.addf %3, %2 : vector<128x128xf32>
    %c0_5 = arith.constant 0 : index
    %c0_6 = arith.constant 0 : index
    %5 = vector.load %arg4[%c0_5, %c0_6] : memref<1x128xf32, #tpu.memory_space<vmem>>, vector<1x128xf32>
    %6 = vector.broadcast %5 : vector<1x128xf32> to vector<128x128xf32>
    %7 = arith.addf %4, %6 : vector<128x128xf32>
    %c0_7 = arith.constant 0 : index
    %c0_8 = arith.constant 0 : index
    %8 = vector.load %arg5[%c0_7, %c0_8] : memref<128x128xf32, #tpu.memory_space<vmem>>, vector<128x128xf32>
    tpu.vector_store %arg5[%c0_7, %c0_8], %7 {strides = array<i32>} : memref<128x128xf32, #tpu.memory_space<vmem>>, vector<128x128xf32>,
    return
  }
  func.func @transform_0(%arg0: i32) -> (i32, i32) {
    %c0_i32 = arith.constant 0 : i32
    %c0_i32_0 = arith.constant 0 : i32
    return %arg0, %c0_i32 : i32, i32
  }
  func.func @transform_1(%arg0: i32) -> (i32, i32) {
    %c0_i32 = arith.constant 0 : i32
    %c0_i32_0 = arith.constant 0 : i32
    return %arg0, %c0_i32 : i32, i32
  }
  func.func @transform_2(%arg0: i32) -> (i32, i32) {
    %c0_i32 = arith.constant 0 : i32
    %c0_i32_0 = arith.constant 0 : i32
    %c0_i32_1 = arith.constant 0 : i32
    return %c0_i32, %c0_i32_0 : i32, i32
  }
  func.func @transform_3(%arg0: i32) -> (i32, i32) {
    %c0_i32 = arith.constant 0 : i32
    %c0_i32_0 = arith.constant 0 : i32
    %c0_i32_1 = arith.constant 0 : i32
    return %c0_i32, %c0_i32_0 : i32, i32
  }
  func.func @transform_4(%arg0: i32) -> (i32, i32) {
    %c0_i32 = arith.constant 0 : i32
    %c0_i32_0 = arith.constant 0 : i32
    return %arg0, %c0_i32 : i32, i32
  }
}

</mosaic_0001>

<llo_original>
// kernel: tpu_custom_call.1
$region0: #{tpu_custom_call.1}
  #allocation0 [shape = 'u32[]', space=smem, size = 0x4, offset = 0x4, fixed_abs, tag = 'smem constant byte address 0x4 - core index']
  #allocation1 [shape = 'u32[144,128]{1,0:T(1,128)}', space=vmem, size = 0x12000, scoped, tag = 'internal scratch']
  %s0 = inlined_call_operand.hbm [shape: f32[256,128], index: 0, kind: input, shape index: {}, may-alias: {0,4}]
  %s1 = inlined_call_operand.vmem [shape: f32[256,128], index: 1, kind: input, shape index: {}]
  %s2 = inlined_call_operand.vmem [shape: f32[128,128], index: 2, kind: input, shape index: {}]
  %s3 = inlined_call_operand.vmem [shape: f32[1,128], index: 3, kind: input, shape index: {}]
  %s4 = inlined_call_operand.hbm [shape: f32[256,128], index: 4, kind: output, shape index: {}, may-alias: {0,4}]
  %s5 = sld [smem:[#allocation0]]
  $region53: #{tpu_custom_call.1} parent=0
    _
  %s7 = ssub.s32 1, %s5
  %s8 = scalar_select 0, %s7, %s5
  $region1: #{tpu_custom_call.1} parent=0
    #allocation2 [shape = 'u8[131072]{0}', space=vmem, size = 0x20000, scoped, tag = 'input window, operand 0']
    #allocation3 [shape = 's32[2]{0}', space=sflag, size = 0x8, scoped, tag = 'scoped memory for tpu_custom_call.1']
    #allocation4 [shape = 's32[2]{0}', space=sflag, size = 0x8, scoped, tag = 'scoped memory for tpu_custom_call.1']
    #allocation5 [shape = 'u8[131072]{0}', space=vmem, size = 0x20000, scoped, tag = 'output window, operand 0']
    %9 = vsyncpa [#allocation3], 0
    %s10 = scalar_lea.sflag [#allocation3], 1
    %11 = vsyncpa %s10, 0
    %12 = vsyncpa [#allocation4], 0
    %s13 = scalar_lea.sflag [#allocation4], 1
    %14 = vsyncpa %s13, 0
    loop: start=0, step=1, limit=4
    $region2: #{tpu_custom_call.1} parent=1 // loop_pre_header
      _
    $region3: #{tpu_custom_call.1} parent=1 // loop_header
      %s16 = sphi 0, %s20
      %p17 = scmp.ge.s32.totalorder %s16, 4
      %s26 = sphi 0, %s28
      %s29 = sphi 0, %s26
      %s30 = sphi 0, %s29
      %s46 = sphi 0, %s30
      %s52 = sphi 0, %s54
      %s55 = sphi 0, %s52
      %s56 = sphi 0, %s55
      %s72 = sphi 0, %s56
      %s76 = sphi 0, %s76
      %s78 = sphi 0, %s76
      %s79 = sphi 0, %s78
      %s93 = sphi 0, %s79
      %s97 = sphi 0, %s97
      %s99 = sphi 0, %s97
      %s100 = sphi 0, %s99
      %s114 = sphi 0, %s100
      %s120 = sphi 0, %s122
      %s123 = sphi 0, %s120
      %s124 = sphi 0, %s123
      %s140 = sphi 0, %s124
    $region4: #{tpu_custom_call.1} parent=1 // loop_header_branch
      %19 = sbr.rel (%p17) target = $region8
    $region5: #{tpu_custom_call.1} parent=1 // loop_body
      %s21 = ssub.s32 %s16, 1
      %s22 = ssub.s32 %s16, 2
      %s23 = sadd.s32 %s16, 1
      %s24 = ssub.s32 %s16, %s23
      %p25 = scmp.eq.s32.totalorder %s24, 0
      %s27 = sadd.s32 %s26, 1
      %s28 = scalar_select %p25, %s26, %s27
      %p31 = pneg %p25
      %p32 = scmp.eq.s32.totalorder %s16, 1
      %p33 = por %p31, %p32
      %p34 = scmp.ne.s32.totalorder %s26, %s29
      %p35 = scmp.eq.s32.totalorder %s16, 0
      %p36 = por %p34, %p35
      %p37 = scmp.ne.s32.totalorder %s26, %s29
      %p38 = scmp.eq.s32.totalorder %s21, 1
      %p39 = por %p37, %p38
      %p40 = scmp.ne.s32.totalorder %s29, %s30
      %p41 = scmp.eq.s32.totalorder %s21, 0
      %p42 = por %p40, %p41
      %p43 = scmp.ne.s32.totalorder %s29, %s30
      %p44 = scmp.eq.s32.totalorder %s22, 1
      %p45 = por %p43, %p44
      %p47 = scmp.ne.s32.totalorder %s30, %s46
      %p48 = scmp.eq.s32.totalorder %s22, 0
      %p49 = por %p47, %p48
      %s50 = ssub.s32 %s16, %s23
      %p51 = scmp.eq.s32.totalorder %s50, 0
      %s53 = sadd.s32 %s52, 1
      %s54 = scalar_select %p51, %s52, %s53
      %p57 = pneg %p51
      %p58 = scmp.eq.s32.totalorder %s16, 1
      %p59 = por %p57, %p58
      %p60 = scmp.ne.s32.totalorder %s52, %s55
      %p61 = scmp.eq.s32.totalorder %s16, 0
      %p62 = por %p60, %p61
      %p63 = scmp.ne.s32.totalorder %s52, %s55
      %p64 = scmp.eq.s32.totalorder %s21, 1
      %p65 = por %p63, %p64
      %p66 = scmp.ne.s32.totalorder %s55, %s56
      %p67 = scmp.eq.s32.totalorder %s21, 0
      %p68 = por %p66, %p67
      %p69 = scmp.ne.s32.totalorder %s55, %s56
      %p70 = scmp.eq.s32.totalorder %s22, 1
      %p71 = por %p69, %p70
      %p73 = scmp.ne.s32.totalorder %s56, %s72
      %p74 = scmp.eq.s32.totalorder %s22, 0
      %p75 = por %p73, %p74
      %s77 = sadd.s32 %s76, 1
      %p80 = scmp.eq.s32.totalorder %s16, 1
      %p81 = scmp.ne.s32.totalorder %s76, %s78
      %p82 = scmp.eq.s32.totalorder %s16, 0
      %p83 = por %p81, %p82
      %p84 = scmp.ne.s32.totalorder %s76, %s78
      %p85 = scmp.eq.s32.totalorder %s21, 1
      %p86 = por %p84, %p85
      %p87 = scmp.ne.s32.totalorder %s78, %s79
      %p88 = scmp.eq.s32.totalorder %s21, 0
      %p89 = por %p87, %p88
      %p90 = scmp.ne.s32.totalorder %s78, %s79
      %p91 = scmp.eq.s32.totalorder %s22, 1
      %p92 = por %p90, %p91
      %p94 = scmp.ne.s32.totalorder %s79, %s93
      %p95 = scmp.eq.s32.totalorder %s22, 0
      %p96 = por %p94, %p95
      %s98 = sadd.s32 %s97, 1
      %p101 = scmp.eq.s32.totalorder %s16, 1
      %p102 = scmp.ne.s32.totalorder %s97, %s99
      %p103 = scmp.eq.s32.totalorder %s16, 0
      %p104 = por %p102, %p103
      %p105 = scmp.ne.s32.totalorder %s97, %s99
      %p106 = scmp.eq.s32.totalorder %s21, 1
      %p107 = por %p105, %p106
      %p108 = scmp.ne.s32.totalorder %s99, %s100
      %p109 = scmp.eq.s32.totalorder %s21, 0
      %p110 = por %p108, %p109
      %p111 = scmp.ne.s32.totalorder %s99, %s100
      %p112 = scmp.eq.s32.totalorder %s22, 1
      %p113 = por %p111, %p112
      %p115 = scmp.ne.s32.totalorder %s100, %s114
      %p116 = scmp.eq.s32.totalorder %s22, 0
      %p117 = por %p115, %p116
      %s118 = ssub.s32 %s16, %s23
      %p119 = scmp.eq.s32.totalorder %s118, 0
      %s121 = sadd.s32 %s120, 1
      %s122 = scalar_select %p119, %s120, %s121
      %p125 = pneg %p119
      %p126 = scmp.eq.s32.totalorder %s16, 1
      %p127 = por %p125, %p126
      %p128 = scmp.ne.s32.totalorder %s120, %s123
      %p129 = scmp.eq.s32.totalorder %s16, 0
      %p130 = por %p128, %p129
      %p131 = scmp.ne.s32.totalorder %s120, %s123
      %p132 = scmp.eq.s32.totalorder %s21, 1
      %p133 = por %p131, %p132
      %p134 = scmp.ne.s32.totalorder %s123, %s124
      %p135 = scmp.eq.s32.totalorder %s21, 0
      %p136 = por %p134, %p135
      %p137 = scmp.ne.s32.totalorder %s123, %s124
      %p138 = scmp.eq.s32.totalorder %s22, 1
      %p139 = por %p137, %p138
      %p141 = scmp.ne.s32.totalorder %s124, %s140
      %p142 = scmp.eq.s32.totalorder %s22, 0
      %p143 = por %p141, %p142
      %p144 = scmp.le.s32.totalorder 1, %s16
      %p145 = scmp.lt.s32.totalorder %s16, 3
      %p146 = pnand %p144, %p145
      %p147 = pneg %p146
      // Predicated region
      $region9: #{tpu_custom_call.1} parent=5 // pred_check
        _
      $region10: #{tpu_custom_call.1} parent=5 // pred_check_branch
        %149 = sbr.rel (%p146) target = $region12
      $region11: #{tpu_custom_call.1} parent=5 // pred_region
        %s150 = ssub.s32 %s16, 1
        // Predicated region
        $region13: #{tpu_custom_call.1} parent=11 // pred_check
          %p151 = pneg %p89
        $region14: #{tpu_custom_call.1} parent=11 // pred_check_branch
          %153 = sbr.rel (%p151) target = $region16
        $region15: #{tpu_custom_call.1} parent=11 // pred_region
          _
        $region16: #{tpu_custom_call.1} parent=11 // pred_fallthru
          _
        // Predicated region
        $region17: #{tpu_custom_call.1} parent=11 // pred_check
          %p154 = pneg %p110
        $region18: #{tpu_custom_call.1} parent=11 // pred_check_branch
          %156 = sbr.rel (%p154) target = $region20
        $region19: #{tpu_custom_call.1} parent=11 // pred_region
          _
        $region20: #{tpu_custom_call.1} parent=11 // pred_fallthru
          _
      $region12: #{tpu_custom_call.1} parent=5 // pred_fallthru
        _
      %p157 = scmp.lt.s32.totalorder %s16, 2
      // Predicated region
      $region21: #{tpu_custom_call.1} parent=5 // pred_check
        %p158 = pneg %p157
      $region22: #{tpu_custom_call.1} parent=5 // pred_check_branch
        %160 = sbr.rel (%p158) target = $region24
      $region23: #{tpu_custom_call.1} parent=5 // pred_region
        // Predicated region
        $region25: #{tpu_custom_call.1} parent=23 // pred_check
          %p161 = pneg %p36
        $region26: #{tpu_custom_call.1} parent=23 // pred_check_branch
          %163 = sbr.rel (%p161) target = $region28
        $region27: #{tpu_custom_call.1} parent=23 // pred_region
          %s164 = sand.u32 %s26, 1
          %s165 = scalar_lea.sflag [#allocation3], %s164
          %s166 = sand.u32 %s26, 1
          %s167 = smul.addr %s166, 128
          %s168 = scalar_lea.vmem [#allocation2], %s167
          %s169 = smul.u32 16, %s16
          %s171 = ssub.s32 2048, 2048
          %172 = vsyncadd %s165, %s171
          %s173 = smul.addr %s169, 128
          %s174 = scalar_lea.hbm %s0, %s173
          %s175 = sshll.u32 %s168, 4
          %s176 = int_to_ptr.vmem [resolvable:$true] %s175
          %181 = dma.hbm_to_vmem [thread:$0]  %s174, 2048, %s176, %s165, 128, 128, 8
        $region28: #{tpu_custom_call.1} parent=23 // pred_fallthru
          _
        // Predicated region
        $region29: #{tpu_custom_call.1} parent=23 // pred_check
          %p182 = pneg %p62
        $region30: #{tpu_custom_call.1} parent=23 // pred_check_branch
          %184 = sbr.rel (%p182) target = $region32
        $region31: #{tpu_custom_call.1} parent=23 // pred_region
          %s185 = smul.u32 16, %s16
          %p186 = scmp.lt.s32.totalorder %s185, 31
          %s187 = scalar_select %p186, %s185, 31
          %s188 = smul.addr %s187, 8
          %s189 = scalar_lea.vmem %s1, %s188
          %s190 = smul.u32 16, %s16
        $region32: #{tpu_custom_call.1} parent=23 // pred_fallthru
          _
      $region24: #{tpu_custom_call.1} parent=5 // pred_fallthru
        _
      %p191 = scmp.le.s32.totalorder 1, %s16
      %p192 = scmp.lt.s32.totalorder %s16, 3
      %p193 = pnand %p191, %p192
      %p194 = pneg %p193
      // Predicated region
      $region33: #{tpu_custom_call.1} parent=5 // pred_check
        _
      $region34: #{tpu_custom_call.1} parent=5 // pred_check_branch
        %196 = sbr.rel (%p193) target = $region36
      $region35: #{tpu_custom_call.1} parent=5 // pred_region
        %s197 = ssub.s32 %s16, 1
        %s198 = sand.u32 %s29, 1
        %s199 = scalar_lea.sflag [#allocation3], %s198
        %s200 = sand.u32 %s29, 1
        %s201 = smul.addr %s200, 128
        %s202 = scalar_lea.vmem [#allocation2], %s201
        // Predicated region
        $region37: #{tpu_custom_call.1} parent=35 // pred_check
          %p203 = pneg %p42
        $region38: #{tpu_custom_call.1} parent=35 // pred_check_branch
          %205 = sbr.rel (%p203) target = $region40
        $region39: #{tpu_custom_call.1} parent=35 // pred_region
          %206 = dma.done %s199, 2048
        $region40: #{tpu_custom_call.1} parent=35 // pred_fallthru
          _
        %s207 = sand.u32 %s29, 1
        %s208 = scalar_lea.sflag [#allocation3], %s207
        %s209 = sand.u32 %s29, 1
        %s210 = smul.addr %s209, 128
        %s211 = scalar_lea.vmem [#allocation2], %s210
        %p212 = pneg %p42
        %p213 = pneg %p39
        %s214 = smul.u32 16, %s21
        %p215 = scmp.lt.s32.totalorder %s214, 31
        %s216 = scalar_select %p215, %s214, 31
        %s217 = smul.addr %s216, 8
        %s218 = scalar_lea.vmem %s1, %s217
        %p219 = pneg %p68
        %p220 = pneg %p65
        %p221 = pneg %p89
        %p222 = pneg %p86
        %p223 = pneg %p110
        %p224 = pneg %p107
        %p225 = pneg %p136
        %p226 = pneg %p133
        %s227 = sand.u32 %s123, 1
        %s228 = scalar_lea.sflag [#allocation4], %s227
        %s229 = sand.u32 %s123, 1
        %s230 = smul.addr %s229, 128
        %s231 = scalar_lea.vmem [#allocation5], %s230
        %s232 = smul.u32 16, %s21
        %s233 = smul.u32 16, %s21
        %p234 = scmp.lt.s32.totalorder %s233, 31
        %s235 = scalar_select %p234, %s233, 31
        %s236 = smul.addr %s235, 8
        %s237 = scalar_lea.vmem %s1, %s236
        %s238 = smul.u32 16, %s21
        %s239 = smul.u32 16, %s21
        %v240 = vld [vmem:[%s237] sm:$0xff]
        %v241 = vld [vmem:[%s237 + $0x8] sm:$0xff]
        %v242 = vld [vmem:[%s237 + $0x10] sm:$0xff]
        %v243 = vld [vmem:[%s237 + $0x18] sm:$0xff]
        %v244 = vld [vmem:[%s237 + $0x20] sm:$0xff]
        %v245 = vld [vmem:[%s237 + $0x28] sm:$0xff]
        %v246 = vld [vmem:[%s237 + $0x30] sm:$0xff]
        %v247 = vld [vmem:[%s237 + $0x38] sm:$0xff]
        %v248 = vld [vmem:[%s237 + $0x40] sm:$0xff]
        %v249 = vld [vmem:[%s237 + $0x48] sm:$0xff]
        %v250 = vld [vmem:[%s237 + $0x50] sm:$0xff]
        %v251 = vld [vmem:[%s237 + $0x58] sm:$0xff]
        %v252 = vld [vmem:[%s237 + $0x60] sm:$0xff]
        %v253 = vld [vmem:[%s237 + $0x68] sm:$0xff]
        %v254 = vld [vmem:[%s237 + $0x70] sm:$0xff]
        %v255 = vld [vmem:[%s237 + $0x78] sm:$0xff]
        %v256 = vld [vmem:[%s2] sm:$0xff]
        %v257 = vld [vmem:[%s2 + $0x8] sm:$0xff]
        %v258 = vld [vmem:[%s2 + $0x10] sm:$0xff]
        %v259 = vld [vmem:[%s2 + $0x18] sm:$0xff]
        %v260 = vld [vmem:[%s2 + $0x20] sm:$0xff]
        %v261 = vld [vmem:[%s2 + $0x28] sm:$0xff]
        %v262 = vld [vmem:[%s2 + $0x30] sm:$0xff]
        %v263 = vld [vmem:[%s2 + $0x38] sm:$0xff]
        %v264 = vld [vmem:[%s2 + $0x40] sm:$0xff]
        %v265 = vld [vmem:[%s2 + $0x48] sm:$0xff]
        %v266 = vld [vmem:[%s2 + $0x50] sm:$0xff]
        %v267 = vld [vmem:[%s2 + $0x58] sm:$0xff]
        %v268 = vld [vmem:[%s2 + $0x60] sm:$0xff]
        %v269 = vld [vmem:[%s2 + $0x68] sm:$0xff]
        %v270 = vld [vmem:[%s2 + $0x70] sm:$0xff]
        %v271 = vld [vmem:[%s2 + $0x78] sm:$0xff]
        %272 = vmatprep.subr.mxu0 0.0
        %v273 = vand.u32 %v256, 4294901760
        %274 = vmatpush1.msra.mxu0 %v273
        %275 = vmatprep.subr.mxu0 0.0
        %v276 = vand.u32 %v257, 4294901760
        %277 = vmatpush1.msra.mxu0 %v276
        %278 = vmatprep.subr.mxu0 0.0
        %v279 = vand.u32 %v258, 4294901760
        %280 = vmatpush1.msra.mxu0 %v279
        %281 = vmatprep.subr.mxu0 0.0
        %v282 = vand.u32 %v259, 4294901760
        %283 = vmatpush1.msra.mxu0 %v282
        %284 = vmatprep.subr.mxu0 0.0
        %v285 = vand.u32 %v260, 4294901760
        %286 = vmatpush1.msra.mxu0 %v285
        %287 = vmatprep.subr.mxu0 0.0
        %v288 = vand.u32 %v261, 4294901760
        %289 = vmatpush1.msra.mxu0 %v288
        %290 = vmatprep.subr.mxu0 0.0
        %v291 = vand.u32 %v262, 4294901760
        %292 = vmatpush1.msra.mxu0 %v291
        %293 = vmatprep.subr.mxu0 0.0
        %v294 = vand.u32 %v263, 4294901760
        %295 = vmatpush1.msra.mxu0 %v294
        %296 = vmatprep.subr.mxu0 0.0
        %v297 = vand.u32 %v264, 4294901760
        %298 = vmatpush1.msra.mxu0 %v297
        %299 = vmatprep.subr.mxu0 0.0
        %v300 = vand.u32 %v265, 4294901760
        %301 = vmatpush1.msra.mxu0 %v300
        %302 = vmatprep.subr.mxu0 0.0
        %v303 = vand.u32 %v266, 4294901760
        %304 = vmatpush1.msra.mxu0 %v303
        %305 = vmatprep.subr.mxu0 0.0
        %v306 = vand.u32 %v267, 4294901760
        %307 = vmatpush1.msra.mxu0 %v306
        %308 = vmatprep.subr.mxu0 0.0
        %v309 = vand.u32 %v268, 4294901760
        %310 = vmatpush1.msra.mxu0 %v309
        %311 = vmatprep.subr.mxu0 0.0
        %v312 = vand.u32 %v269, 4294901760
        %313 = vmatpush1.msra.mxu0 %v312
        %314 = vmatprep.subr.mxu0 0.0
        %v315 = vand.u32 %v270, 4294901760
        %316 = vmatpush1.msra.mxu0 %v315
        %317 = vmatprep.subr.mxu0 0.0
        %v318 = vand.u32 %v271, 4294901760
        %319 = vmatpush1.msra.mxu0 %v318
        %320 = vmatprep.subr.mxu0 0.0
        %321 = vmatpush1.msra.mxu0 0.0
        %322 = vmatprep.subr.mxu0 0.0
        %323 = vmatpush1.msra.mxu0 0.0
        %324 = vmatprep.subr.mxu0 0.0
        %325 = vmatpush1.msra.mxu0 0.0
        %326 = vmatprep.subr.mxu0 0.0
        %327 = vmatpush1.msra.mxu0 0.0
        %328 = vmatprep.subr.mxu0 0.0
        %329 = vmatpush1.msra.mxu0 0.0
        %330 = vmatprep.subr.mxu0 0.0
        %331 = vmatpush1.msra.mxu0 0.0
        %332 = vmatprep.subr.mxu0 0.0
        %333 = vmatpush1.msra.mxu0 0.0
        %334 = vmatprep.subr.mxu0 0.0
        %335 = vmatpush1.msra.mxu0 0.0
        %336 = vmatprep.subr.mxu0 0.0
        %337 = vmatpush1.msra.mxu0 0.0
        %338 = vmatprep.subr.mxu0 0.0
        %339 = vmatpush1.msra.mxu0 0.0
        %340 = vmatprep.subr.mxu0 0.0
        %341 = vmatpush1.msra.mxu0 0.0
        %342 = vmatprep.subr.mxu0 0.0
        %343 = vmatpush1.msra.mxu0 0.0
        %344 = vmatprep.subr.mxu0 0.0
        %345 = vmatpush1.msra.mxu0 0.0
        %346 = vmatprep.subr.mxu0 0.0
        %347 = vmatpush1.msra.mxu0 0.0
        %348 = vmatprep.subr.mxu0 0.0
        %349 = vmatpush1.msra.mxu0 0.0
        %350 = vmatprep.subr.mxu0 0.0
        %351 = vmatpush1.msra.mxu0 0.0
        %352 = vmatprep.mubr.f32.mxu0 0.0
        %v353 = vand.u32 %v240, 4294901760
        %v354 = vsub.f32 %v240, %v353
        %v355 = vand.u32 %v354, 4294901760
        %v356 = vsub.f32 %v354, %v355
        %v357 = vand.u32 %v356, 4294901760
        %358 = vmatmul.mubr.f32.gmra.mrb[0].mxu0 %v357
        %v359 = vpop.f32.mrb[0].mxu0
        %v360 = vadd.f32 0.0, %v359
        %v361 = vpop.f32.mrb[0].mxu0
        %362 = vmatprep.mubr.f32.mxu0 0.0
        %v363 = vand.u32 %v241, 4294901760
        %v364 = vsub.f32 %v241, %v363
        %v365 = vand.u32 %v364, 4294901760
        %v366 = vsub.f32 %v364, %v365
        %v367 = vand.u32 %v366, 4294901760
        %368 = vmatmul.mubr.f32.gmra.mrb[0].mxu0 %v367
        %v369 = vpop.f32.mrb[0].mxu0
        %v370 = vadd.f32 0.0, %v369
        %v371 = vpop.f32.mrb[0].mxu0
        %372 = vmatprep.mubr.f32.mxu0 0.0
        %v373 = vand.u32 %v242, 4294901760
        %v374 = vsub.f32 %v242, %v373
        %v375 = vand.u32 %v374, 4294901760
        %v376 = vsub.f32 %v374, %v375
        %v377 = vand.u32 %v376, 4294901760
        %378 = vmatmul.mubr.f32.gmra.mrb[0].mxu0 %v377
        %v379 = vpop.f32.mrb[0].mxu0
        %v380 = vadd.f32 0.0, %v379
        %v381 = vpop.f32.mrb[0].mxu0
        %382 = vmatprep.mubr.f32.mxu0 0.0
        %v383 = vand.u32 %v243, 4294901760
        %v384 = vsub.f32 %v243, %v383
        %v385 = vand.u32 %v384, 4294901760
        %v386 = vsub.f32 %v384, %v385
        %v387 = vand.u32 %v386, 4294901760
        %388 = vmatmul.mubr.f32.gmra.mrb[0].mxu0 %v387
        %v389 = vpop.f32.mrb[0].mxu0
        %v390 = vadd.f32 0.0, %v389
        %v391 = vpop.f32.mrb[0].mxu0
        %392 = vmatprep.mubr.f32.mxu0 0.0
        %v393 = vand.u32 %v244, 4294901760
        %v394 = vsub.f32 %v244, %v393
        %v395 = vand.u32 %v394, 4294901760
        %v396 = vsub.f32 %v394, %v395
        %v397 = vand.u32 %v396, 4294901760
        %398 = vmatmul.mubr.f32.gmra.mrb[0].mxu0 %v397
        %v399 = vpop.f32.mrb[0].mxu0
        %v400 = vadd.f32 0.0, %v399
        %v401 = vpop.f32.mrb[0].mxu0
        %402 = vmatprep.mubr.f32.mxu0 0.0
        %v403 = vand.u32 %v245, 4294901760
        %v404 = vsub.f32 %v245, %v403
        %v405 = vand.u32 %v404, 4294901760
        %v406 = vsub.f32 %v404, %v405
        %v407 = vand.u32 %v406, 4294901760
        %408 = vmatmul.mubr.f32.gmra.mrb[0].mxu0 %v407
        %v409 = vpop.f32.mrb[0].mxu0
        %v410 = vadd.f32 0.0, %v409
        %v411 = vpop.f32.mrb[0].mxu0
        %412 = vmatprep.mubr.f32.mxu0 0.0
        %v413 = vand.u32 %v246, 4294901760
        %v414 = vsub.f32 %v246, %v413
        %v415 = vand.u32 %v414, 4294901760
        %v416 = vsub.f32 %v414, %v415
        %v417 = vand.u32 %v416, 4294901760
        %418 = vmatmul.mubr.f32.gmra.mrb[0].mxu0 %v417
        %v419 = vpop.f32.mrb[0].mxu0
        %v420 = vadd.f32 0.0, %v419
        %v421 = vpop.f32.mrb[0].mxu0
        %422 = vmatprep.mubr.f32.mxu0 0.0
        %v423 = vand.u32 %v247, 4294901760
        %v424 = vsub.f32 %v247, %v423
        %v425 = vand.u32 %v424, 4294901760
        %v426 = vsub.f32 %v424, %v425
        %v427 = vand.u32 %v426, 4294901760
        %428 = vmatmul.mubr.f32.gmra.mrb[0].mxu0 %v427
        %v429 = vpop.f32.mrb[0].mxu0
        %v430 = vadd.f32 0.0, %v429
        %v431 = vpop.f32.mrb[0].mxu0
        %432 = vmatprep.mubr.f32.mxu0 0.0
        %v433 = vand.u32 %v248, 4294901760
        %v434 = vsub.f32 %v248, %v433
        %v435 = vand.u32 %v434, 4294901760
        %v436 = vsub.f32 %v434, %v435
        %v437 = vand.u32 %v436, 4294901760
        %438 = vmatmul.mubr.f32.gmra.mrb[0].mxu0 %v437
        %v439 = vpop.f32.mrb[0].mxu0
        %v440 = vadd.f32 0.0, %v439
        %v441 = vpop.f32.mrb[0].mxu0
        %442 = vmatprep.mubr.f32.mxu0 0.0
        %v443 = vand.u32 %v249, 4294901760
        %v444 = vsub.f32 %v249, %v443
        %v445 = vand.u32 %v444, 4294901760
        %v446 = vsub.f32 %v444, %v445
        %v447 = vand.u32 %v446, 4294901760
        %448 = vmatmul.mubr.f32.gmra.mrb[0].mxu0 %v447
        %v449 = vpop.f32.mrb[0].mxu0
        %v450 = vadd.f32 0.0, %v449
        %v451 = vpop.f32.mrb[0].mxu0
        %452 = vmatprep.mubr.f32.mxu0 0.0
        %v453 = vand.u32 %v250, 4294901760
        %v454 = vsub.f32 %v250, %v453
        %v455 = vand.u32 %v454, 4294901760
        %v456 = vsub.f32 %v454, %v455
        %v457 = vand.u32 %v456, 4294901760
        %458 = vmatmul.mubr.f32.gmra.mrb[0].mxu0 %v457
        %v459 = vpop.f32.mrb[0].mxu0
        %v460 = vadd.f32 0.0, %v459
        %v461 = vpop.f32.mrb[0].mxu0
        %462 = vmatprep.mubr.f32.mxu0 0.0
        %v463 = vand.u32 %v251, 4294901760
        %v464 = vsub.f32 %v251, %v463
        %v465 = vand.u32 %v464, 4294901760
        %v466 = vsub.f32 %v464, %v465
        %v467 = vand.u32 %v466, 4294901760
        %468 = vmatmul.mubr.f32.gmra.mrb[0].mxu0 %v467
        %v469 = vpop.f32.mrb[0].mxu0
        %v470 = vadd.f32 0.0, %v469
        %v471 = vpop.f32.mrb[0].mxu0
        %472 = vmatprep.mubr.f32.mxu0 0.0
        %v473 = vand.u32 %v252, 4294901760
        %v474 = vsub.f32 %v252, %v473
        %v475 = vand.u32 %v474, 4294901760
        %v476 = vsub.f32 %v474, %v475
        %v477 = vand.u32 %v476, 4294901760
        %478 = vmatmul.mubr.f32.gmra.mrb[0].mxu0 %v477
        %v479 = vpop.f32.mrb[0].mxu0
        %v480 = vadd.f32 0.0, %v479
        %v481 = vpop.f32.mrb[0].mxu0
        %482 = vmatprep.mubr.f32.mxu0 0.0
        %v483 = vand.u32 %v253, 4294901760
        %v484 = vsub.f32 %v253, %v483
        %v485 = vand.u32 %v484, 4294901760
        %v486 = vsub.f32 %v484, %v485
        %v487 = vand.u32 %v486, 4294901760
        %488 = vmatmul.mubr.f32.gmra.mrb[0].mxu0 %v487
        %v489 = vpop.f32.mrb[0].mxu0
        %v490 = vadd.f32 0.0, %v489
        %v491 = vpop.f32.mrb[0].mxu0
        %492 = vmatprep.mubr.f32.mxu0 0.0
        %v493 = vand.u32 %v254, 4294901760
        %v494 = vsub.f32 %v254, %v493
        %v495 = vand.u32 %v494, 4294901760
        %v496 = vsub.f32 %v494, %v495
        %v497 = vand.u32 %v496, 4294901760
        %498 = vmatmul.mubr.f32.gmra.mrb[0].mxu0 %v497
        %v499 = vpop.f32.mrb[0].mxu0
        %v500 = vadd.f32 0.0, %v499
        %v501 = vpop.f32.mrb[0].mxu0
        %502 = vmatprep.mubr.f32.mxu0 0.0
        %v503 = vand.u32 %v255, 4294901760
        %v504 = vsub.f32 %v255, %v503
        %v505 = vand.u32 %v504, 4294901760
        %v506 = vsub.f32 %v504, %v505
        %v507 = vand.u32 %v506, 4294901760
        %508 = vmatmul.mubr.f32.gmra.mrb[0].mxu0 %v507
        %v509 = vpop.f32.mrb[0].mxu0
        %v510 = vadd.f32 0.0, %v509
        %v511 = vpop.f32.mrb[0].mxu0
        %512 = vdwg.mxu0
        %513 = vmatprep.subr.mxu0 0.0
        %v514 = vand.u32 %v256, 4294901760
        %v515 = vsub.f32 %v256, %v514
        %v516 = vand.u32 %v515, 4294901760
        %v517 = vsub.f32 %v515, %v516
        %v518 = vand.u32 %v517, 4294901760
        %519 = vmatpush1.msra.mxu0 %v518
        %520 = vmatprep.subr.mxu0 0.0
        %v521 = vand.u32 %v257, 4294901760
        %v522 = vsub.f32 %v257, %v521
        %v523 = vand.u32 %v522, 4294901760
        %v524 = vsub.f32 %v522, %v523
        %v525 = vand.u32 %v524, 4294901760
        %526 = vmatpush1.msra.mxu0 %v525
        %527 = vmatprep.subr.mxu0 0.0
        %v528 = vand.u32 %v258, 4294901760
        %v529 = vsub.f32 %v258, %v528
        %v530 = vand.u32 %v529, 4294901760
        %v531 = vsub.f32 %v529, %v530
        %v532 = vand.u32 %v531, 4294901760
        %533 = vmatpush1.msra.mxu0 %v532
        %534 = vmatprep.subr.mxu0 0.0
        %v535 = vand.u32 %v259, 4294901760
        %v536 = vsub.f32 %v259, %v535
        %v537 = vand.u32 %v536, 4294901760
        %v538 = vsub.f32 %v536, %v537
        %v539 = vand.u32 %v538, 4294901760
        %540 = vmatpush1.msra.mxu0 %v539
        %541 = vmatprep.subr.mxu0 0.0
        %v542 = vand.u32 %v260, 4294901760
        %v543 = vsub.f32 %v260, %v542
        %v544 = vand.u32 %v543, 4294901760
        %v545 = vsub.f32 %v543, %v544
        %v546 = vand.u32 %v545, 4294901760
        %547 = vmatpush1.msra.mxu0 %v546
        %548 = vmatprep.subr.mxu0 0.0
        %v549 = vand.u32 %v261, 4294901760
        %v550 = vsub.f32 %v261, %v549
        %v551 = vand.u32 %v550, 4294901760
        %v552 = vsub.f32 %v550, %v551
        %v553 = vand.u32 %v552, 4294901760
        %554 = vmatpush1.msra.mxu0 %v553
        %555 = vmatprep.subr.mxu0 0.0
        %v556 = vand.u32 %v262, 4294901760
        %v557 = vsub.f32 %v262, %v556
        %v558 = vand.u32 %v557, 4294901760
        %v559 = vsub.f32 %v557, %v558
        %v560 = vand.u32 %v559, 4294901760
        %561 = vmatpush1.msra.mxu0 %v560
        %562 = vmatprep.subr.mxu0 0.0
        %v563 = vand.u32 %v263, 4294901760
        %v564 = vsub.f32 %v263, %v563
        %v565 = vand.u32 %v564, 4294901760
        %v566 = vsub.f32 %v564, %v565
        %v567 = vand.u32 %v566, 4294901760
        %568 = vmatpush1.msra.mxu0 %v567
        %569 = vmatprep.subr.mxu0 0.0
        %v570 = vand.u32 %v264, 4294901760
        %v571 = vsub.f32 %v264, %v570
        %v572 = vand.u32 %v571, 4294901760
        %v573 = vsub.f32 %v571, %v572
        %v574 = vand.u32 %v573, 4294901760
        %575 = vmatpush1.msra.mxu0 %v574
        %576 = vmatprep.subr.mxu0 0.0
        %v577 = vand.u32 %v265, 4294901760
        %v578 = vsub.f32 %v265, %v577
        %v579 = vand.u32 %v578, 4294901760
        %v580 = vsub.f32 %v578, %v579
        %v581 = vand.u32 %v580, 4294901760
        %582 = vmatpush1.msra.mxu0 %v581
        %583 = vmatprep.subr.mxu0 0.0
        %v584 = vand.u32 %v266, 4294901760
        %v585 = vsub.f32 %v266, %v584
        %v586 = vand.u32 %v585, 4294901760
        %v587 = vsub.f32 %v585, %v586
        %v588 = vand.u32 %v587, 4294901760
        %589 = vmatpush1.msra.mxu0 %v588
        %590 = vmatprep.subr.mxu0 0.0
        %v591 = vand.u32 %v267, 4294901760
        %v592 = vsub.f32 %v267, %v591
        %v593 = vand.u32 %v592, 4294901760
        %v594 = vsub.f32 %v592, %v593
        %v595 = vand.u32 %v594, 4294901760
        %596 = vmatpush1.msra.mxu0 %v595
        %597 = vmatprep.subr.mxu0 0.0
        %v598 = vand.u32 %v268, 4294901760
        %v599 = vsub.f32 %v268, %v598
        %v600 = vand.u32 %v599, 4294901760
        %v601 = vsub.f32 %v599, %v600
        %v602 = vand.u32 %v601, 4294901760
        %603 = vmatpush1.msra.mxu0 %v602
        %604 = vmatprep.subr.mxu0 0.0
        %v605 = vand.u32 %v269, 4294901760
        %v606 = vsub.f32 %v269, %v605
        %v607 = vand.u32 %v606, 4294901760
        %v608 = vsub.f32 %v606, %v607
        %v609 = vand.u32 %v608, 4294901760
        %610 = vmatpush1.msra.mxu0 %v609
        %611 = vmatprep.subr.mxu0 0.0
        %v612 = vand.u32 %v270, 4294901760
        %v613 = vsub.f32 %v270, %v612
        %v614 = vand.u32 %v613, 4294901760
        %v615 = vsub.f32 %v613, %v614
        %v616 = vand.u32 %v615, 4294901760
        %617 = vmatpush1.msra.mxu0 %v616
        %618 = vmatprep.subr.mxu0 0.0
        %v619 = vand.u32 %v271, 4294901760
        %v620 = vsub.f32 %v271, %v619
        %v621 = vand.u32 %v620, 4294901760
        %v622 = vsub.f32 %v620, %v621
        %v623 = vand.u32 %v622, 4294901760
        %624 = vmatpush1.msra.mxu0 %v623
        %625 = vmatprep.subr.mxu0 0.0
        %626 = vmatpush1.msra.mxu0 0.0
        %627 = vmatprep.subr.mxu0 0.0
        %628 = vmatpush1.msra.mxu0 0.0
        %629 = vmatprep.subr.mxu0 0.0
        %630 = vmatpush1.msra.mxu0 0.0
        %631 = vmatprep.subr.mxu0 0.0
        %632 = vmatpush1.msra.mxu0 0.0
        %633 = vmatprep.subr.mxu0 0.0
        %634 = vmatpush1.msra.mxu0 0.0
        %635 = vmatprep.subr.mxu0 0.0
        %636 = vmatpush1.msra.mxu0 0.0
        %637 = vmatprep.subr.mxu0 0.0
        %638 = vmatpush1.msra.mxu0 0.0
        %639 = vmatprep.subr.mxu0 0.0
        %640 = vmatpush1.msra.mxu0 0.0
        %641 = vmatprep.subr.mxu0 0.0
        %642 = vmatpush1.msra.mxu0 0.0
        %643 = vmatprep.subr.mxu0 0.0
        %644 = vmatpush1.msra.mxu0 0.0
        %645 = vmatprep.subr.mxu0 0.0
        %646 = vmatpush1.msra.mxu0 0.0
        %647 = vmatprep.subr.mxu0 0.0
        %648 = vmatpush1.msra.mxu0 0.0
        %649 = vmatprep.subr.mxu0 0.0
        %650 = vmatpush1.msra.mxu0 0.0
        %651 = vmatprep.subr.mxu0 0.0
        %652 = vmatpush1.msra.mxu0 0.0
        %653 = vmatprep.subr.mxu0 0.0
        %654 = vmatpush1.msra.mxu0 0.0
        %655 = vmatprep.subr.mxu0 0.0
        %656 = vmatpush1.msra.mxu0 0.0
        %657 = vmatprep.mubr.f32.mxu0 0.0
        %v658 = vand.u32 %v240, 4294901760
        %659 = vmatmul.mubr.f32.gmra.mrb[0].mxu0 %v658
        %v660 = vpop.f32.mrb[0].mxu0
        %v661 = vadd.f32 %v360, %v660
        %v662 = vpop.f32.mrb[0].mxu0
        %663 = vmatprep.mubr.f32.mxu0 0.0
        %v664 = vand.u32 %v241, 4294901760
        %665 = vmatmul.mubr.f32.gmra.mrb[0].mxu0 %v664
        %v666 = vpop.f32.mrb[0].mxu0
        %v667 = vadd.f32 %v370, %v666
        %v668 = vpop.f32.mrb[0].mxu0
        %669 = vmatprep.mubr.f32.mxu0 0.0
        %v670 = vand.u32 %v242, 4294901760
        %671 = vmatmul.mubr.f32.gmra.mrb[0].mxu0 %v670
        %v672 = vpop.f32.mrb[0].mxu0
        %v673 = vadd.f32 %v380, %v672
        %v674 = vpop.f32.mrb[0].mxu0
        %675 = vmatprep.mubr.f32.mxu0 0.0
        %v676 = vand.u32 %v243, 4294901760
        %677 = vmatmul.mubr.f32.gmra.mrb[0].mxu0 %v676
        %v678 = vpop.f32.mrb[0].mxu0
        %v679 = vadd.f32 %v390, %v678
        %v680 = vpop.f32.mrb[0].mxu0
        %681 = vmatprep.mubr.f32.mxu0 0.0
        %v682 = vand.u32 %v244, 4294901760
        %683 = vmatmul.mubr.f32.gmra.mrb[0].mxu0 %v682
        %v684 = vpop.f32.mrb[0].mxu0
        %v685 = vadd.f32 %v400, %v684
        %v686 = vpop.f32.mrb[0].mxu0
        %687 = vmatprep.mubr.f32.mxu0 0.0
        %v688 = vand.u32 %v245, 4294901760
        %689 = vmatmul.mubr.f32.gmra.mrb[0].mxu0 %v688
        %v690 = vpop.f32.mrb[0].mxu0
        %v691 = vadd.f32 %v410, %v690
        %v692 = vpop.f32.mrb[0].mxu0
        %693 = vmatprep.mubr.f32.mxu0 0.0
        %v694 = vand.u32 %v246, 4294901760
        %695 = vmatmul.mubr.f32.gmra.mrb[0].mxu0 %v694
        %v696 = vpop.f32.mrb[0].mxu0
        %v697 = vadd.f32 %v420, %v696
        %v698 = vpop.f32.mrb[0].mxu0
        %699 = vmatprep.mubr.f32.mxu0 0.0
        %v700 = vand.u32 %v247, 4294901760
        %701 = vmatmul.mubr.f32.gmra.mrb[0].mxu0 %v700
        %v702 = vpop.f32.mrb[0].mxu0
        %v703 = vadd.f32 %v430, %v702
        %v704 = vpop.f32.mrb[0].mxu0
        %705 = vmatprep.mubr.f32.mxu0 0.0
        %v706 = vand.u32 %v248, 4294901760
        %707 = vmatmul.mubr.f32.gmra.mrb[0].mxu0 %v706
        %v708 = vpop.f32.mrb[0].mxu0
        %v709 = vadd.f32 %v440, %v708
        %v710 = vpop.f32.mrb[0].mxu0
        %711 = vmatprep.mubr.f32.mxu0 0.0
        %v712 = vand.u32 %v249, 4294901760
        %713 = vmatmul.mubr.f32.gmra.mrb[0].mxu0 %v712
        %v714 = vpop.f32.mrb[0].mxu0
        %v715 = vadd.f32 %v450, %v714
        %v716 = vpop.f32.mrb[0].mxu0
        %717 = vmatprep.mubr.f32.mxu0 0.0
        %v718 = vand.u32 %v250, 4294901760
        %719 = vmatmul.mubr.f32.gmra.mrb[0].mxu0 %v718
        %v720 = vpop.f32.mrb[0].mxu0
        %v721 = vadd.f32 %v460, %v720
        %v722 = vpop.f32.mrb[0].mxu0
        %723 = vmatprep.mubr.f32.mxu0 0.0
        %v724 = vand.u32 %v251, 4294901760
        %725 = vmatmul.mubr.f32.gmra.mrb[0].mxu0 %v724
        %v726 = vpop.f32.mrb[0].mxu0
        %v727 = vadd.f32 %v470, %v726
        %v728 = vpop.f32.mrb[0].mxu0
        %729 = vmatprep.mubr.f32.mxu0 0.0
        %v730 = vand.u32 %v252, 4294901760
        %731 = vmatmul.mubr.f32.gmra.mrb[0].mxu0 %v730
        %v732 = vpop.f32.mrb[0].mxu0
        %v733 = vadd.f32 %v480, %v732
        %v734 = vpop.f32.mrb[0].mxu0
        %735 = vmatprep.mubr.f32.mxu0 0.0
        %v736 = vand.u32 %v253, 4294901760
        %737 = vmatmul.mubr.f32.gmra.mrb[0].mxu0 %v736
        %v738 = vpop.f32.mrb[0].mxu0
        %v739 = vadd.f32 %v490, %v738
        %v740 = vpop.f32.mrb[0].mxu0
        %741 = vmatprep.mubr.f32.mxu0 0.0
        %v742 = vand.u32 %v254, 4294901760
        %743 = vmatmul.mubr.f32.gmra.mrb[0].mxu0 %v742
        %v744 = vpop.f32.mrb[0].mxu0
        %v745 = vadd.f32 %v500, %v744
        %v746 = vpop.f32.mrb[0].mxu0
        %747 = vmatprep.mubr.f32.mxu0 0.0
        %v748 = vand.u32 %v255, 4294901760
        %749 = vmatmul.mubr.f32.gmra.mrb[0].mxu0 %v748
        %v750 = vpop.f32.mrb[0].mxu0
        %v751 = vadd.f32 %v510, %v750
        %v752 = vpop.f32.mrb[0].mxu0
        %753 = vdwg.mxu0
        %754 = vmatprep.subr.mxu0 0.0
        %v755 = vand.u32 %v256, 4294901760
        %v756 = vsub.f32 %v256, %v755
        %757 = vmatpush1.msra.mxu0 %v756
        %758 = vmatprep.subr.mxu0 0.0
        %v759 = vand.u32 %v257, 4294901760
        %v760 = vsub.f32 %v257, %v759
        %761 = vmatpush1.msra.mxu0 %v760
        %762 = vmatprep.subr.mxu0 0.0
        %v763 = vand.u32 %v258, 4294901760
        %v764 = vsub.f32 %v258, %v763
        %765 = vmatpush1.msra.mxu0 %v764
        %766 = vmatprep.subr.mxu0 0.0
        %v767 = vand.u32 %v259, 4294901760
        %v768 = vsub.f32 %v259, %v767
        %769 = vmatpush1.msra.mxu0 %v768
        %770 = vmatprep.subr.mxu0 0.0
        %v771 = vand.u32 %v260, 4294901760
        %v772 = vsub.f32 %v260, %v771
        %773 = vmatpush1.msra.mxu0 %v772
        %774 = vmatprep.subr.mxu0 0.0
        %v775 = vand.u32 %v261, 4294901760
        %v776 = vsub.f32 %v261, %v775
        %777 = vmatpush1.msra.mxu0 %v776
        %778 = vmatprep.subr.mxu0 0.0
        %v779 = vand.u32 %v262, 4294901760
        %v780 = vsub.f32 %v262, %v779
        %781 = vmatpush1.msra.mxu0 %v780
        %782 = vmatprep.subr.mxu0 0.0
        %v783 = vand.u32 %v263, 4294901760
        %v784 = vsub.f32 %v263, %v783
        %785 = vmatpush1.msra.mxu0 %v784
        %786 = vmatprep.subr.mxu0 0.0
        %v787 = vand.u32 %v264, 4294901760
        %v788 = vsub.f32 %v264, %v787
        %789 = vmatpush1.msra.mxu0 %v788
        %790 = vmatprep.subr.mxu0 0.0
        %v791 = vand.u32 %v265, 4294901760
        %v792 = vsub.f32 %v265, %v791
        %793 = vmatpush1.msra.mxu0 %v792
        %794 = vmatprep.subr.mxu0 0.0
        %v795 = vand.u32 %v266, 4294901760
        %v796 = vsub.f32 %v266, %v795
        %797 = vmatpush1.msra.mxu0 %v796
        %798 = vmatprep.subr.mxu0 0.0
        %v799 = vand.u32 %v267, 4294901760
        %v800 = vsub.f32 %v267, %v799
        %801 = vmatpush1.msra.mxu0 %v800
        %802 = vmatprep.subr.mxu0 0.0
        %v803 = vand.u32 %v268, 4294901760
        %v804 = vsub.f32 %v268, %v803
        %805 = vmatpush1.msra.mxu0 %v804
        %806 = vmatprep.subr.mxu0 0.0
        %v807 = vand.u32 %v269, 4294901760
        %v808 = vsub.f32 %v269, %v807
        %809 = vmatpush1.msra.mxu0 %v808
        %810 = vmatprep.subr.mxu0 0.0
        %v811 = vand.u32 %v270, 4294901760
        %v812 = vsub.f32 %v270, %v811
        %813 = vmatpush1.msra.mxu0 %v812
        %814 = vmatprep.subr.mxu0 0.0
        %v815 = vand.u32 %v271, 4294901760
        %v816 = vsub.f32 %v271, %v815
        %817 = vmatpush1.msra.mxu0 %v816
        %818 = vmatprep.subr.mxu0 0.0
        %819 = vmatpush1.msra.mxu0 0.0
        %820 = vmatprep.subr.mxu0 0.0
        %821 = vmatpush1.msra.mxu0 0.0
        %822 = vmatprep.subr.mxu0 0.0
        %823 = vmatpush1.msra.mxu0 0.0
        %824 = vmatprep.subr.mxu0 0.0
        %825 = vmatpush1.msra.mxu0 0.0
        %826 = vmatprep.subr.mxu0 0.0
        %827 = vmatpush1.msra.mxu0 0.0
        %828 = vmatprep.subr.mxu0 0.0
        %829 = vmatpush1.msra.mxu0 0.0
        %830 = vmatprep.subr.mxu0 0.0
        %831 = vmatpush1.msra.mxu0 0.0
        %832 = vmatprep.subr.mxu0 0.0
        %833 = vmatpush1.msra.mxu0 0.0
        %834 = vmatprep.subr.mxu0 0.0
        %835 = vmatpush1.msra.mxu0 0.0
        %836 = vmatprep.subr.mxu0 0.0
        %837 = vmatpush1.msra.mxu0 0.0
        %838 = vmatprep.subr.mxu0 0.0
        %839 = vmatpush1.msra.mxu0 0.0
        %840 = vmatprep.subr.mxu0 0.0
        %841 = vmatpush1.msra.mxu0 0.0
        %842 = vmatprep.subr.mxu0 0.0
        %843 = vmatpush1.msra.mxu0 0.0
        %844 = vmatprep.subr.mxu0 0.0
        %845 = vmatpush1.msra.mxu0 0.0
        %846 = vmatprep.subr.mxu0 0.0
        %847 = vmatpush1.msra.mxu0 0.0
        %848 = vmatprep.subr.mxu0 0.0
        %849 = vmatpush1.msra.mxu0 0.0
        %850 = vmatprep.mubr.f32.mxu0 0.0
        %v851 = vand.u32 %v240, 4294901760
        %v852 = vsub.f32 %v240, %v851
        %853 = vmatmul.mubr.f32.gmra.mrb[0].mxu0 %v852
        %v854 = vpop.f32.mrb[0].mxu0
        %v855 = vadd.f32 %v661, %v854
        %v856 = vpop.f32.mrb[0].mxu0
        %857 = vmatprep.mubr.f32.mxu0 0.0
        %v858 = vand.u32 %v241, 4294901760
        %v859 = vsub.f32 %v241, %v858
        %860 = vmatmul.mubr.f32.gmra.mrb[0].mxu0 %v859
        %v861 = vpop.f32.mrb[0].mxu0
        %v862 = vadd.f32 %v667, %v861
        %v863 = vpop.f32.mrb[0].mxu0
        %864 = vmatprep.mubr.f32.mxu0 0.0
        %v865 = vand.u32 %v242, 4294901760
        %v866 = vsub.f32 %v242, %v865
        %867 = vmatmul.mubr.f32.gmra.mrb[0].mxu0 %v866
        %v868 = vpop.f32.mrb[0].mxu0
        %v869 = vadd.f32 %v673, %v868
        %v870 = vpop.f32.mrb[0].mxu0
        %871 = vmatprep.mubr.f32.mxu0 0.0
        %v872 = vand.u32 %v243, 4294901760
        %v873 = vsub.f32 %v243, %v872
        %874 = vmatmul.mubr.f32.gmra.mrb[0].mxu0 %v873
        %v875 = vpop.f32.mrb[0].mxu0
        %v876 = vadd.f32 %v679, %v875
        %v877 = vpop.f32.mrb[0].mxu0
        %878 = vmatprep.mubr.f32.mxu0 0.0
        %v879 = vand.u32 %v244, 4294901760
        %v880 = vsub.f32 %v244, %v879
        %881 = vmatmul.mubr.f32.gmra.mrb[0].mxu0 %v880
        %v882 = vpop.f32.mrb[0].mxu0
        %v883 = vadd.f32 %v685, %v882
        %v884 = vpop.f32.mrb[0].mxu0
        %885 = vmatprep.mubr.f32.mxu0 0.0
        %v886 = vand.u32 %v245, 4294901760
        %v887 = vsub.f32 %v245, %v886
        %888 = vmatmul.mubr.f32.gmra.mrb[0].mxu0 %v887
        %v889 = vpop.f32.mrb[0].mxu0
        %v890 = vadd.f32 %v691, %v889
        %v891 = vpop.f32.mrb[0].mxu0
        %892 = vmatprep.mubr.f32.mxu0 0.0
        %v893 = vand.u32 %v246, 4294901760
        %v894 = vsub.f32 %v246, %v893
        %895 = vmatmul.mubr.f32.gmra.mrb[0].mxu0 %v894
        %v896 = vpop.f32.mrb[0].mxu0
        %v897 = vadd.f32 %v697, %v896
        %v898 = vpop.f32.mrb[0].mxu0
        %899 = vmatprep.mubr.f32.mxu0 0.0
        %v900 = vand.u32 %v247, 4294901760
        %v901 = vsub.f32 %v247, %v900
        %902 = vmatmul.mubr.f32.gmra.mrb[0].mxu0 %v901
        %v903 = vpop.f32.mrb[0].mxu0
        %v904 = vadd.f32 %v703, %v903
        %v905 = vpop.f32.mrb[0].mxu0
        %906 = vmatprep.mubr.f32.mxu0 0.0
        %v907 = vand.u32 %v248, 4294901760
        %v908 = vsub.f32 %v248, %v907
        %909 = vmatmul.mubr.f32.gmra.mrb[0].mxu0 %v908
        %v910 = vpop.f32.mrb[0].mxu0
        %v911 = vadd.f32 %v709, %v910
        %v912 = vpop.f32.mrb[0].mxu0
        %913 = vmatprep.mubr.f32.mxu0 0.0
        %v914 = vand.u32 %v249, 4294901760
        %v915 = vsub.f32 %v249, %v914
        %916 = vmatmul.mubr.f32.gmra.mrb[0].mxu0 %v915
        %v917 = vpop.f32.mrb[0].mxu0
        %v918 = vadd.f32 %v715, %v917
        %v919 = vpop.f32.mrb[0].mxu0
        %920 = vmatprep.mubr.f32.mxu0 0.0
        %v921 = vand.u32 %v250, 4294901760
        %v922 = vsub.f32 %v250, %v921
        %923 = vmatmul.mubr.f32.gmra.mrb[0].mxu0 %v922
        %v924 = vpop.f32.mrb[0].mxu0
        %v925 = vadd.f32 %v721, %v924
        %v926 = vpop.f32.mrb[0].mxu0
        %927 = vmatprep.mubr.f32.mxu0 0.0
        %v928 = vand.u32 %v251, 4294901760
        %v929 = vsub.f32 %v251, %v928
        %930 = vmatmul.mubr.f32.gmra.mrb[0].mxu0 %v929
        %v931 = vpop.f32.mrb[0].mxu0
        %v932 = vadd.f32 %v727, %v931
        %v933 = vpop.f32.mrb[0].mxu0
        %934 = vmatprep.mubr.f32.mxu0 0.0
        %v935 = vand.u32 %v252, 4294901760
        %v936 = vsub.f32 %v252, %v935
        %937 = vmatmul.mubr.f32.gmra.mrb[0].mxu0 %v936
        %v938 = vpop.f32.mrb[0].mxu0
        %v939 = vadd.f32 %v733, %v938
        %v940 = vpop.f32.mrb[0].mxu0
        %941 = vmatprep.mubr.f32.mxu0 0.0
        %v942 = vand.u32 %v253, 4294901760
        %v943 = vsub.f32 %v253, %v942
        %944 = vmatmul.mubr.f32.gmra.mrb[0].mxu0 %v943
        %v945 = vpop.f32.mrb[0].mxu0
        %v946 = vadd.f32 %v739, %v945
        %v947 = vpop.f32.mrb[0].mxu0
        %948 = vmatprep.mubr.f32.mxu0 0.0
        %v949 = vand.u32 %v254, 4294901760
        %v950 = vsub.f32 %v254, %v949
        %951 = vmatmul.mubr.f32.gmra.mrb[0].mxu0 %v950
        %v952 = vpop.f32.mrb[0].mxu0
        %v953 = vadd.f32 %v745, %v952
        %v954 = vpop.f32.mrb[0].mxu0
        %955 = vmatprep.mubr.f32.mxu0 0.0
        %v956 = vand.u32 %v255, 4294901760
        %v957 = vsub.f32 %v255, %v956
        %958 = vmatmul.mubr.f32.gmra.mrb[0].mxu0 %v957
        %v959 = vpop.f32.mrb[0].mxu0
        %v960 = vadd.f32 %v751, %v959
        %v961 = vpop.f32.mrb[0].mxu0
        %962 = vdwg.mxu0
        %963 = vmatprep.subr.mxu0 0.0
        %v964 = vand.u32 %v256, 4294901760
        %965 = vmatpush1.msra.mxu0 %v964
        %966 = vmatprep.subr.mxu0 0.0
        %v967 = vand.u32 %v257, 4294901760
        %968 = vmatpush1.msra.mxu0 %v967
        %969 = vmatprep.subr.mxu0 0.0
        %v970 = vand.u32 %v258, 4294901760
        %971 = vmatpush1.msra.mxu0 %v970
        %972 = vmatprep.subr.mxu0 0.0
        %v973 = vand.u32 %v259, 4294901760
        %974 = vmatpush1.msra.mxu0 %v973
        %975 = vmatprep.subr.mxu0 0.0
        %v976 = vand.u32 %v260, 4294901760
        %977 = vmatpush1.msra.mxu0 %v976
        %978 = vmatprep.subr.mxu0 0.0
        %v979 = vand.u32 %v261, 4294901760
        %980 = vmatpush1.msra.mxu0 %v979
        %981 = vmatprep.subr.mxu0 0.0
        %v982 = vand.u32 %v262, 4294901760
        %983 = vmatpush1.msra.mxu0 %v982
        %984 = vmatprep.subr.mxu0 0.0
        %v985 = vand.u32 %v263, 4294901760
        %986 = vmatpush1.msra.mxu0 %v985
        %987 = vmatprep.subr.mxu0 0.0
        %v988 = vand.u32 %v264, 4294901760
        %989 = vmatpush1.msra.mxu0 %v988
        %990 = vmatprep.subr.mxu0 0.0
        %v991 = vand.u32 %v265, 4294901760
        %992 = vmatpush1.msra.mxu0 %v991
        %993 = vmatprep.subr.mxu0 0.0
        %v994 = vand.u32 %v266, 4294901760
        %995 = vmatpush1.msra.mxu0 %v994
        %996 = vmatprep.subr.mxu0 0.0
        %v997 = vand.u32 %v267, 4294901760
        %998 = vmatpush1.msra.mxu0 %v997
        %999 = vmatprep.subr.mxu0 0.0
        %v1000 = vand.u32 %v268, 4294901760
        %1001 = vmatpush1.msra.mxu0 %v1000
        %1002 = vmatprep.subr.mxu0 0.0
        %v1003 = vand.u32 %v269, 4294901760
        %1004 = vmatpush1.msra.mxu0 %v1003
        %1005 = vmatprep.subr.mxu0 0.0
        %v1006 = vand.u32 %v270, 4294901760
        %1007 = vmatpush1.msra.mxu0 %v1006
        %1008 = vmatprep.subr.mxu0 0.0
        %v1009 = vand.u32 %v271, 4294901760
        %1010 = vmatpush1.msra.mxu0 %v1009
        %1011 = vmatprep.subr.mxu0 0.0
        %1012 = vmatpush1.msra.mxu0 0.0
        %1013 = vmatprep.subr.mxu0 0.0
        %1014 = vmatpush1.msra.mxu0 0.0
        %1015 = vmatprep.subr.mxu0 0.0
        %1016 = vmatpush1.msra.mxu0 0.0
        %1017 = vmatprep.subr.mxu0 0.0
        %1018 = vmatpush1.msra.mxu0 0.0
        %1019 = vmatprep.subr.mxu0 0.0
        %1020 = vmatpush1.msra.mxu0 0.0
        %1021 = vmatprep.subr.mxu0 0.0
        %1022 = vmatpush1.msra.mxu0 0.0
        %1023 = vmatprep.subr.mxu0 0.0
        %1024 = vmatpush1.msra.mxu0 0.0
        %1025 = vmatprep.subr.mxu0 0.0
        %1026 = vmatpush1.msra.mxu0 0.0
        %1027 = vmatprep.subr.mxu0 0.0
        %1028 = vmatpush1.msra.mxu0 0.0
        %1029 = vmatprep.subr.mxu0 0.0
        %1030 = vmatpush1.msra.mxu0 0.0
        %1031 = vmatprep.subr.mxu0 0.0
        %1032 = vmatpush1.msra.mxu0 0.0
        %1033 = vmatprep.subr.mxu0 0.0
        %1034 = vmatpush1.msra.mxu0 0.0
        %1035 = vmatprep.subr.mxu0 0.0
        %1036 = vmatpush1.msra.mxu0 0.0
        %1037 = vmatprep.subr.mxu0 0.0
        %1038 = vmatpush1.msra.mxu0 0.0
        %1039 = vmatprep.subr.mxu0 0.0
        %1040 = vmatpush1.msra.mxu0 0.0
        %1041 = vmatprep.subr.mxu0 0.0
        %1042 = vmatpush1.msra.mxu0 0.0
        %1043 = vmatprep.mubr.f32.mxu0 0.0
        %v1044 = vand.u32 %v240, 4294901760
        %v1045 = vsub.f32 %v240, %v1044
        %v1046 = vand.u32 %v1045, 4294901760
        %1047 = vmatmul.mubr.f32.gmra.mrb[0].mxu0 %v1046
        %v1048 = vpop.f32.mrb[0].mxu0
        %v1049 = vadd.f32 %v855, %v1048
        %v1050 = vpop.f32.mrb[0].mxu0
        %1051 = vmatprep.mubr.f32.mxu0 0.0
        %v1052 = vand.u32 %v241, 4294901760
        %v1053 = vsub.f32 %v241, %v1052
        %v1054 = vand.u32 %v1053, 4294901760
        %1055 = vmatmul.mubr.f32.gmra.mrb[0].mxu0 %v1054
        %v1056 = vpop.f32.mrb[0].mxu0
        %v1057 = vadd.f32 %v862, %v1056
        %v1058 = vpop.f32.mrb[0].mxu0
        %1059 = vmatprep.mubr.f32.mxu0 0.0
        %v1060 = vand.u32 %v242, 4294901760
        %v1061 = vsub.f32 %v242, %v1060
        %v1062 = vand.u32 %v1061, 4294901760
        %1063 = vmatmul.mubr.f32.gmra.mrb[0].mxu0 %v1062
        %v1064 = vpop.f32.mrb[0].mxu0
        %v1065 = vadd.f32 %v869, %v1064
        %v1066 = vpop.f32.mrb[0].mxu0
        %1067 = vmatprep.mubr.f32.mxu0 0.0
        %v1068 = vand.u32 %v243, 4294901760
        %v1069 = vsub.f32 %v243, %v1068
        %v1070 = vand.u32 %v1069, 4294901760
        %1071 = vmatmul.mubr.f32.gmra.mrb[0].mxu0 %v1070
        %v1072 = vpop.f32.mrb[0].mxu0
        %v1073 = vadd.f32 %v876, %v1072
        %v1074 = vpop.f32.mrb[0].mxu0
        %1075 = vmatprep.mubr.f32.mxu0 0.0
        %v1076 = vand.u32 %v244, 4294901760
        %v1077 = vsub.f32 %v244, %v1076
        %v1078 = vand.u32 %v1077, 4294901760
        %1079 = vmatmul.mubr.f32.gmra.mrb[0].mxu0 %v1078
        %v1080 = vpop.f32.mrb[0].mxu0
        %v1081 = vadd.f32 %v883, %v1080
        %v1082 = vpop.f32.mrb[0].mxu0
        %1083 = vmatprep.mubr.f32.mxu0 0.0
        %v1084 = vand.u32 %v245, 4294901760
        %v1085 = vsub.f32 %v245, %v1084
        %v1086 = vand.u32 %v1085, 4294901760
        %1087 = vmatmul.mubr.f32.gmra.mrb[0].mxu0 %v1086
        %v1088 = vpop.f32.mrb[0].mxu0
        %v1089 = vadd.f32 %v890, %v1088
        %v1090 = vpop.f32.mrb[0].mxu0
        %1091 = vmatprep.mubr.f32.mxu0 0.0
        %v1092 = vand.u32 %v246, 4294901760
        %v1093 = vsub.f32 %v246, %v1092
        %v1094 = vand.u32 %v1093, 4294901760
        %1095 = vmatmul.mubr.f32.gmra.mrb[0].mxu0 %v1094
        %v1096 = vpop.f32.mrb[0].mxu0
        %v1097 = vadd.f32 %v897, %v1096
        %v1098 = vpop.f32.mrb[0].mxu0
        %1099 = vmatprep.mubr.f32.mxu0 0.0
        %v1100 = vand.u32 %v247, 4294901760
        %v1101 = vsub.f32 %v247, %v1100
        %v1102 = vand.u32 %v1101, 4294901760
        %1103 = vmatmul.mubr.f32.gmra.mrb[0].mxu0 %v1102
        %v1104 = vpop.f32.mrb[0].mxu0
        %v1105 = vadd.f32 %v904, %v1104
        %v1106 = vpop.f32.mrb[0].mxu0
        %1107 = vmatprep.mubr.f32.mxu0 0.0
        %v1108 = vand.u32 %v248, 4294901760
        %v1109 = vsub.f32 %v248, %v1108
        %v1110 = vand.u32 %v1109, 4294901760
        %1111 = vmatmul.mubr.f32.gmra.mrb[0].mxu0 %v1110
        %v1112 = vpop.f32.mrb[0].mxu0
        %v1113 = vadd.f32 %v911, %v1112
        %v1114 = vpop.f32.mrb[0].mxu0
        %1115 = vmatprep.mubr.f32.mxu0 0.0
        %v1116 = vand.u32 %v249, 4294901760
        %v1117 = vsub.f32 %v249, %v1116
        %v1118 = vand.u32 %v1117, 4294901760
        %1119 = vmatmul.mubr.f32.gmra.mrb[0].mxu0 %v1118
        %v1120 = vpop.f32.mrb[0].mxu0
        %v1121 = vadd.f32 %v918, %v1120
        %v1122 = vpop.f32.mrb[0].mxu0
        %1123 = vmatprep.mubr.f32.mxu0 0.0
        %v1124 = vand.u32 %v250, 4294901760
        %v1125 = vsub.f32 %v250, %v1124
        %v1126 = vand.u32 %v1125, 4294901760
        %1127 = vmatmul.mubr.f32.gmra.mrb[0].mxu0 %v1126
        %v1128 = vpop.f32.mrb[0].mxu0
        %v1129 = vadd.f32 %v925, %v1128
        %v1130 = vpop.f32.mrb[0].mxu0
        %1131 = vmatprep.mubr.f32.mxu0 0.0
        %v1132 = vand.u32 %v251, 4294901760
        %v1133 = vsub.f32 %v251, %v1132
        %v1134 = vand.u32 %v1133, 4294901760
        %1135 = vmatmul.mubr.f32.gmra.mrb[0].mxu0 %v1134
        %v1136 = vpop.f32.mrb[0].mxu0
        %v1137 = vadd.f32 %v932, %v1136
        %v1138 = vpop.f32.mrb[0].mxu0
        %1139 = vmatprep.mubr.f32.mxu0 0.0
        %v1140 = vand.u32 %v252, 4294901760
        %v1141 = vsub.f32 %v252, %v1140
        %v1142 = vand.u32 %v1141, 4294901760
        %1143 = vmatmul.mubr.f32.gmra.mrb[0].mxu0 %v1142
        %v1144 = vpop.f32.mrb[0].mxu0
        %v1145 = vadd.f32 %v939, %v1144
        %v1146 = vpop.f32.mrb[0].mxu0
        %1147 = vmatprep.mubr.f32.mxu0 0.0
        %v1148 = vand.u32 %v253, 4294901760
        %v1149 = vsub.f32 %v253, %v1148
        %v1150 = vand.u32 %v1149, 4294901760
        %1151 = vmatmul.mubr.f32.gmra.mrb[0].mxu0 %v1150
        %v1152 = vpop.f32.mrb[0].mxu0
        %v1153 = vadd.f32 %v946, %v1152
        %v1154 = vpop.f32.mrb[0].mxu0
        %1155 = vmatprep.mubr.f32.mxu0 0.0
        %v1156 = vand.u32 %v254, 4294901760
        %v1157 = vsub.f32 %v254, %v1156
        %v1158 = vand.u32 %v1157, 4294901760
        %1159 = vmatmul.mubr.f32.gmra.mrb[0].mxu0 %v1158
        %v1160 = vpop.f32.mrb[0].mxu0
        %v1161 = vadd.f32 %v953, %v1160
        %v1162 = vpop.f32.mrb[0].mxu0
        %1163 = vmatprep.mubr.f32.mxu0 0.0
        %v1164 = vand.u32 %v255, 4294901760
        %v1165 = vsub.f32 %v255, %v1164
        %v1166 = vand.u32 %v1165, 4294901760
        %1167 = vmatmul.mubr.f32.gmra.mrb[0].mxu0 %v1166
        %v1168 = vpop.f32.mrb[0].mxu0
        %v1169 = vadd.f32 %v960, %v1168
        %v1170 = vpop.f32.mrb[0].mxu0
        %1171 = vdwg.mxu0
        %1172 = vmatprep.subr.mxu0 0.0
        %v1173 = vand.u32 %v256, 4294901760
        %v1174 = vsub.f32 %v256, %v1173
        %v1175 = vand.u32 %v1174, 4294901760
        %1176 = vmatpush1.msra.mxu0 %v1175
        %1177 = vmatprep.subr.mxu0 0.0
        %v1178 = vand.u32 %v257, 4294901760
        %v1179 = vsub.f32 %v257, %v1178
        %v1180 = vand.u32 %v1179, 4294901760
        %1181 = vmatpush1.msra.mxu0 %v1180
        %1182 = vmatprep.subr.mxu0 0.0
        %v1183 = vand.u32 %v258, 4294901760
        %v1184 = vsub.f32 %v258, %v1183
        %v1185 = vand.u32 %v1184, 4294901760
        %1186 = vmatpush1.msra.mxu0 %v1185
        %1187 = vmatprep.subr.mxu0 0.0
        %v1188 = vand.u32 %v259, 4294901760
        %v1189 = vsub.f32 %v259, %v1188
        %v1190 = vand.u32 %v1189, 4294901760
        %1191 = vmatpush1.msra.mxu0 %v1190
        %1192 = vmatprep.subr.mxu0 0.0
        %v1193 = vand.u32 %v260, 4294901760
        %v1194 = vsub.f32 %v260, %v1193
        %v1195 = vand.u32 %v1194, 4294901760
        %1196 = vmatpush1.msra.mxu0 %v1195
        %1197 = vmatprep.subr.mxu0 0.0
        %v1198 = vand.u32 %v261, 4294901760
        %v1199 = vsub.f32 %v261, %v1198
        %v1200 = vand.u32 %v1199, 4294901760
        %1201 = vmatpush1.msra.mxu0 %v1200
        %1202 = vmatprep.subr.mxu0 0.0
        %v1203 = vand.u32 %v262, 4294901760
        %v1204 = vsub.f32 %v262, %v1203
        %v1205 = vand.u32 %v1204, 4294901760
        %1206 = vmatpush1.msra.mxu0 %v1205
        %1207 = vmatprep.subr.mxu0 0.0
        %v1208 = vand.u32 %v263, 4294901760
        %v1209 = vsub.f32 %v263, %v1208
        %v1210 = vand.u32 %v1209, 4294901760
        %1211 = vmatpush1.msra.mxu0 %v1210
        %1212 = vmatprep.subr.mxu0 0.0
        %v1213 = vand.u32 %v264, 4294901760
        %v1214 = vsub.f32 %v264, %v1213
        %v1215 = vand.u32 %v1214, 4294901760
        %1216 = vmatpush1.msra.mxu0 %v1215
        %1217 = vmatprep.subr.mxu0 0.0
        %v1218 = vand.u32 %v265, 4294901760
        %v1219 = vsub.f32 %v265, %v1218
        %v1220 = vand.u32 %v1219, 4294901760
        %1221 = vmatpush1.msra.mxu0 %v1220
        %1222 = vmatprep.subr.mxu0 0.0
        %v1223 = vand.u32 %v266, 4294901760
        %v1224 = vsub.f32 %v266, %v1223
        %v1225 = vand.u32 %v1224, 4294901760
        %1226 = vmatpush1.msra.mxu0 %v1225
        %1227 = vmatprep.subr.mxu0 0.0
        %v1228 = vand.u32 %v267, 4294901760
        %v1229 = vsub.f32 %v267, %v1228
        %v1230 = vand.u32 %v1229, 4294901760
        %1231 = vmatpush1.msra.mxu0 %v1230
        %1232 = vmatprep.subr.mxu0 0.0
        %v1233 = vand.u32 %v268, 4294901760
        %v1234 = vsub.f32 %v268, %v1233
        %v1235 = vand.u32 %v1234, 4294901760
        %1236 = vmatpush1.msra.mxu0 %v1235
        %1237 = vmatprep.subr.mxu0 0.0
        %v1238 = vand.u32 %v269, 4294901760
        %v1239 = vsub.f32 %v269, %v1238
        %v1240 = vand.u32 %v1239, 4294901760
        %1241 = vmatpush1.msra.mxu0 %v1240
        %1242 = vmatprep.subr.mxu0 0.0
        %v1243 = vand.u32 %v270, 4294901760
        %v1244 = vsub.f32 %v270, %v1243
        %v1245 = vand.u32 %v1244, 4294901760
        %1246 = vmatpush1.msra.mxu0 %v1245
        %1247 = vmatprep.subr.mxu0 0.0
        %v1248 = vand.u32 %v271, 4294901760
        %v1249 = vsub.f32 %v271, %v1248
        %v1250 = vand.u32 %v1249, 4294901760
        %1251 = vmatpush1.msra.mxu0 %v1250
        %1252 = vmatprep.subr.mxu0 0.0
        %1253 = vmatpush1.msra.mxu0 0.0
        %1254 = vmatprep.subr.mxu0 0.0
        %1255 = vmatpush1.msra.mxu0 0.0
        %1256 = vmatprep.subr.mxu0 0.0
        %1257 = vmatpush1.msra.mxu0 0.0
        %1258 = vmatprep.subr.mxu0 0.0
        %1259 = vmatpush1.msra.mxu0 0.0
        %1260 = vmatprep.subr.mxu0 0.0
        %1261 = vmatpush1.msra.mxu0 0.0
        %1262 = vmatprep.subr.mxu0 0.0
        %1263 = vmatpush1.msra.mxu0 0.0
        %1264 = vmatprep.subr.mxu0 0.0
        %1265 = vmatpush1.msra.mxu0 0.0
        %1266 = vmatprep.subr.mxu0 0.0
        %1267 = vmatpush1.msra.mxu0 0.0
        %1268 = vmatprep.subr.mxu0 0.0
        %1269 = vmatpush1.msra.mxu0 0.0
        %1270 = vmatprep.subr.mxu0 0.0
        %1271 = vmatpush1.msra.mxu0 0.0
        %1272 = vmatprep.subr.mxu0 0.0
        %1273 = vmatpush1.msra.mxu0 0.0
        %1274 = vmatprep.subr.mxu0 0.0
        %1275 = vmatpush1.msra.mxu0 0.0
        %1276 = vmatprep.subr.mxu0 0.0
        %1277 = vmatpush1.msra.mxu0 0.0
        %1278 = vmatprep.subr.mxu0 0.0
        %1279 = vmatpush1.msra.mxu0 0.0
        %1280 = vmatprep.subr.mxu0 0.0
        %1281 = vmatpush1.msra.mxu0 0.0
        %1282 = vmatprep.subr.mxu0 0.0
        %1283 = vmatpush1.msra.mxu0 0.0
        %1284 = vmatprep.mubr.f32.mxu0 0.0
        %v1285 = vand.u32 %v240, 4294901760
        %1286 = vmatmul.mubr.f32.gmra.mrb[0].mxu0 %v1285
        %v1287 = vpop.f32.mrb[0].mxu0
        %v1288 = vadd.f32 %v1049, %v1287
        %v1289 = vpop.f32.mrb[0].mxu0
        %1290 = vmatprep.mubr.f32.mxu0 0.0
        %v1291 = vand.u32 %v241, 4294901760
        %1292 = vmatmul.mubr.f32.gmra.mrb[0].mxu0 %v1291
        %v1293 = vpop.f32.mrb[0].mxu0
        %v1294 = vadd.f32 %v1057, %v1293
        %v1295 = vpop.f32.mrb[0].mxu0
        %1296 = vmatprep.mubr.f32.mxu0 0.0
        %v1297 = vand.u32 %v242, 4294901760
        %1298 = vmatmul.mubr.f32.gmra.mrb[0].mxu0 %v1297
        %v1299 = vpop.f32.mrb[0].mxu0
        %v1300 = vadd.f32 %v1065, %v1299
        %v1301 = vpop.f32.mrb[0].mxu0
        %1302 = vmatprep.mubr.f32.mxu0 0.0
        %v1303 = vand.u32 %v243, 4294901760
        %1304 = vmatmul.mubr.f32.gmra.mrb[0].mxu0 %v1303
        %v1305 = vpop.f32.mrb[0].mxu0
        %v1306 = vadd.f32 %v1073, %v1305
        %v1307 = vpop.f32.mrb[0].mxu0
        %1308 = vmatprep.mubr.f32.mxu0 0.0
        %v1309 = vand.u32 %v244, 4294901760
        %1310 = vmatmul.mubr.f32.gmra.mrb[0].mxu0 %v1309
        %v1311 = vpop.f32.mrb[0].mxu0
        %v1312 = vadd.f32 %v1081, %v1311
        %v1313 = vpop.f32.mrb[0].mxu0
        %1314 = vmatprep.mubr.f32.mxu0 0.0
        %v1315 = vand.u32 %v245, 4294901760
        %1316 = vmatmul.mubr.f32.gmra.mrb[0].mxu0 %v1315
        %v1317 = vpop.f32.mrb[0].mxu0
        %v1318 = vadd.f32 %v1089, %v1317
        %v1319 = vpop.f32.mrb[0].mxu0
        %1320 = vmatprep.mubr.f32.mxu0 0.0
        %v1321 = vand.u32 %v246, 4294901760
        %1322 = vmatmul.mubr.f32.gmra.mrb[0].mxu0 %v1321
        %v1323 = vpop.f32.mrb[0].mxu0
        %v1324 = vadd.f32 %v1097, %v1323
        %v1325 = vpop.f32.mrb[0].mxu0
        %1326 = vmatprep.mubr.f32.mxu0 0.0
        %v1327 = vand.u32 %v247, 4294901760
        %1328 = vmatmul.mubr.f32.gmra.mrb[0].mxu0 %v1327
        %v1329 = vpop.f32.mrb[0].mxu0
        %v1330 = vadd.f32 %v1105, %v1329
        %v1331 = vpop.f32.mrb[0].mxu0
        %1332 = vmatprep.mubr.f32.mxu0 0.0
        %v1333 = vand.u32 %v248, 4294901760
        %1334 = vmatmul.mubr.f32.gmra.mrb[0].mxu0 %v1333
        %v1335 = vpop.f32.mrb[0].mxu0
        %v1336 = vadd.f32 %v1113, %v1335
        %v1337 = vpop.f32.mrb[0].mxu0
        %1338 = vmatprep.mubr.f32.mxu0 0.0
        %v1339 = vand.u32 %v249, 4294901760
        %1340 = vmatmul.mubr.f32.gmra.mrb[0].mxu0 %v1339
        %v1341 = vpop.f32.mrb[0].mxu0
        %v1342 = vadd.f32 %v1121, %v1341
        %v1343 = vpop.f32.mrb[0].mxu0
        %1344 = vmatprep.mubr.f32.mxu0 0.0
        %v1345 = vand.u32 %v250, 4294901760
        %1346 = vmatmul.mubr.f32.gmra.mrb[0].mxu0 %v1345
        %v1347 = vpop.f32.mrb[0].mxu0
        %v1348 = vadd.f32 %v1129, %v1347
        %v1349 = vpop.f32.mrb[0].mxu0
        %1350 = vmatprep.mubr.f32.mxu0 0.0
        %v1351 = vand.u32 %v251, 4294901760
        %1352 = vmatmul.mubr.f32.gmra.mrb[0].mxu0 %v1351
        %v1353 = vpop.f32.mrb[0].mxu0
        %v1354 = vadd.f32 %v1137, %v1353
        %v1355 = vpop.f32.mrb[0].mxu0
        %1356 = vmatprep.mubr.f32.mxu0 0.0
        %v1357 = vand.u32 %v252, 4294901760
        %1358 = vmatmul.mubr.f32.gmra.mrb[0].mxu0 %v1357
        %v1359 = vpop.f32.mrb[0].mxu0
        %v1360 = vadd.f32 %v1145, %v1359
        %v1361 = vpop.f32.mrb[0].mxu0
        %1362 = vmatprep.mubr.f32.mxu0 0.0
        %v1363 = vand.u32 %v253, 4294901760
        %1364 = vmatmul.mubr.f32.gmra.mrb[0].mxu0 %v1363
        %v1365 = vpop.f32.mrb[0].mxu0
        %v1366 = vadd.f32 %v1153, %v1365
        %v1367 = vpop.f32.mrb[0].mxu0
        %1368 = vmatprep.mubr.f32.mxu0 0.0
        %v1369 = vand.u32 %v254, 4294901760
        %1370 = vmatmul.mubr.f32.gmra.mrb[0].mxu0 %v1369
        %v1371 = vpop.f32.mrb[0].mxu0
        %v1372 = vadd.f32 %v1161, %v1371
        %v1373 = vpop.f32.mrb[0].mxu0
        %1374 = vmatprep.mubr.f32.mxu0 0.0
        %v1375 = vand.u32 %v255, 4294901760
        %1376 = vmatmul.mubr.f32.gmra.mrb[0].mxu0 %v1375
        %v1377 = vpop.f32.mrb[0].mxu0
        %v1378 = vadd.f32 %v1169, %v1377
        %v1379 = vpop.f32.mrb[0].mxu0
        %1380 = vdwg.mxu0
        %1381 = vmatprep.subr.mxu0 0.0
        %v1382 = vand.u32 %v256, 4294901760
        %1383 = vmatpush1.msra.mxu0 %v1382
        %1384 = vmatprep.subr.mxu0 0.0
        %v1385 = vand.u32 %v257, 4294901760
        %1386 = vmatpush1.msra.mxu0 %v1385
        %1387 = vmatprep.subr.mxu0 0.0
        %v1388 = vand.u32 %v258, 4294901760
        %1389 = vmatpush1.msra.mxu0 %v1388
        %1390 = vmatprep.subr.mxu0 0.0
        %v1391 = vand.u32 %v259, 4294901760
        %1392 = vmatpush1.msra.mxu0 %v1391
        %1393 = vmatprep.subr.mxu0 0.0
        %v1394 = vand.u32 %v260, 4294901760
        %1395 = vmatpush1.msra.mxu0 %v1394
        %1396 = vmatprep.subr.mxu0 0.0
        %v1397 = vand.u32 %v261, 4294901760
        %1398 = vmatpush1.msra.mxu0 %v1397
        %1399 = vmatprep.subr.mxu0 0.0
        %v1400 = vand.u32 %v262, 4294901760
        %1401 = vmatpush1.msra.mxu0 %v1400
        %1402 = vmatprep.subr.mxu0 0.0
        %v1403 = vand.u32 %v263, 4294901760
        %1404 = vmatpush1.msra.mxu0 %v1403
        %1405 = vmatprep.subr.mxu0 0.0
        %v1406 = vand.u32 %v264, 4294901760
        %1407 = vmatpush1.msra.mxu0 %v1406
        %1408 = vmatprep.subr.mxu0 0.0
        %v1409 = vand.u32 %v265, 4294901760
        %1410 = vmatpush1.msra.mxu0 %v1409
        %1411 = vmatprep.subr.mxu0 0.0
        %v1412 = vand.u32 %v266, 4294901760
        %1413 = vmatpush1.msra.mxu0 %v1412
        %1414 = vmatprep.subr.mxu0 0.0
        %v1415 = vand.u32 %v267, 4294901760
        %1416 = vmatpush1.msra.mxu0 %v1415
        %1417 = vmatprep.subr.mxu0 0.0
        %v1418 = vand.u32 %v268, 4294901760
        %1419 = vmatpush1.msra.mxu0 %v1418
        %1420 = vmatprep.subr.mxu0 0.0
        %v1421 = vand.u32 %v269, 4294901760
        %1422 = vmatpush1.msra.mxu0 %v1421
        %1423 = vmatprep.subr.mxu0 0.0
        %v1424 = vand.u32 %v270, 4294901760
        %1425 = vmatpush1.msra.mxu0 %v1424
        %1426 = vmatprep.subr.mxu0 0.0
        %v1427 = vand.u32 %v271, 4294901760
        %1428 = vmatpush1.msra.mxu0 %v1427
        %1429 = vmatprep.subr.mxu0 0.0
        %1430 = vmatpush1.msra.mxu0 0.0
        %1431 = vmatprep.subr.mxu0 0.0
        %1432 = vmatpush1.msra.mxu0 0.0
        %1433 = vmatprep.subr.mxu0 0.0
        %1434 = vmatpush1.msra.mxu0 0.0
        %1435 = vmatprep.subr.mxu0 0.0
        %1436 = vmatpush1.msra.mxu0 0.0
        %1437 = vmatprep.subr.mxu0 0.0
        %1438 = vmatpush1.msra.mxu0 0.0
        %1439 = vmatprep.subr.mxu0 0.0
        %1440 = vmatpush1.msra.mxu0 0.0
        %1441 = vmatprep.subr.mxu0 0.0
        %1442 = vmatpush1.msra.mxu0 0.0
        %1443 = vmatprep.subr.mxu0 0.0
        %1444 = vmatpush1.msra.mxu0 0.0
        %1445 = vmatprep.subr.mxu0 0.0
        %1446 = vmatpush1.msra.mxu0 0.0
        %1447 = vmatprep.subr.mxu0 0.0
        %1448 = vmatpush1.msra.mxu0 0.0
        %1449 = vmatprep.subr.mxu0 0.0
        %1450 = vmatpush1.msra.mxu0 0.0
        %1451 = vmatprep.subr.mxu0 0.0
        %1452 = vmatpush1.msra.mxu0 0.0
        %1453 = vmatprep.subr.mxu0 0.0
        %1454 = vmatpush1.msra.mxu0 0.0
        %1455 = vmatprep.subr.mxu0 0.0
        %1456 = vmatpush1.msra.mxu0 0.0
        %1457 = vmatprep.subr.mxu0 0.0
        %1458 = vmatpush1.msra.mxu0 0.0
        %1459 = vmatprep.subr.mxu0 0.0
        %1460 = vmatpush1.msra.mxu0 0.0
        %1461 = vmatprep.mubr.f32.mxu0 0.0
        %v1462 = vand.u32 %v240, 4294901760
        %1463 = vmatmul.mubr.f32.gmra.mrb[0].mxu0 %v1462
        %v1464 = vpop.f32.mrb[0].mxu0
        %v1465 = vadd.f32 %v1288, %v1464
        %v1466 = vpop.f32.mrb[0].mxu0
        %1467 = vmatprep.mubr.f32.mxu0 0.0
        %v1468 = vand.u32 %v241, 4294901760
        %1469 = vmatmul.mubr.f32.gmra.mrb[0].mxu0 %v1468
        %v1470 = vpop.f32.mrb[0].mxu0
        %v1471 = vadd.f32 %v1294, %v1470
        %v1472 = vpop.f32.mrb[0].mxu0
        %1473 = vmatprep.mubr.f32.mxu0 0.0
        %v1474 = vand.u32 %v242, 4294901760
        %1475 = vmatmul.mubr.f32.gmra.mrb[0].mxu0 %v1474
        %v1476 = vpop.f32.mrb[0].mxu0
        %v1477 = vadd.f32 %v1300, %v1476
        %v1478 = vpop.f32.mrb[0].mxu0
        %1479 = vmatprep.mubr.f32.mxu0 0.0
        %v1480 = vand.u32 %v243, 4294901760
        %1481 = vmatmul.mubr.f32.gmra.mrb[0].mxu0 %v1480
        %v1482 = vpop.f32.mrb[0].mxu0
        %v1483 = vadd.f32 %v1306, %v1482
        %v1484 = vpop.f32.mrb[0].mxu0
        %1485 = vmatprep.mubr.f32.mxu0 0.0
        %v1486 = vand.u32 %v244, 4294901760
        %1487 = vmatmul.mubr.f32.gmra.mrb[0].mxu0 %v1486
        %v1488 = vpop.f32.mrb[0].mxu0
        %v1489 = vadd.f32 %v1312, %v1488
        %v1490 = vpop.f32.mrb[0].mxu0
        %1491 = vmatprep.mubr.f32.mxu0 0.0
        %v1492 = vand.u32 %v245, 4294901760
        %1493 = vmatmul.mubr.f32.gmra.mrb[0].mxu0 %v1492
        %v1494 = vpop.f32.mrb[0].mxu0
        %v1495 = vadd.f32 %v1318, %v1494
        %v1496 = vpop.f32.mrb[0].mxu0
        %1497 = vmatprep.mubr.f32.mxu0 0.0
        %v1498 = vand.u32 %v246, 4294901760
        %1499 = vmatmul.mubr.f32.gmra.mrb[0].mxu0 %v1498
        %v1500 = vpop.f32.mrb[0].mxu0
        %v1501 = vadd.f32 %v1324, %v1500
        %v1502 = vpop.f32.mrb[0].mxu0
        %1503 = vmatprep.mubr.f32.mxu0 0.0
        %v1504 = vand.u32 %v247, 4294901760
        %1505 = vmatmul.mubr.f32.gmra.mrb[0].mxu0 %v1504
        %v1506 = vpop.f32.mrb[0].mxu0
        %v1507 = vadd.f32 %v1330, %v1506
        %v1508 = vpop.f32.mrb[0].mxu0
        %1509 = vmatprep.mubr.f32.mxu0 0.0
        %v1510 = vand.u32 %v248, 4294901760
        %1511 = vmatmul.mubr.f32.gmra.mrb[0].mxu0 %v1510
        %v1512 = vpop.f32.mrb[0].mxu0
        %v1513 = vadd.f32 %v1336, %v1512
        %v1514 = vpop.f32.mrb[0].mxu0
        %1515 = vmatprep.mubr.f32.mxu0 0.0
        %v1516 = vand.u32 %v249, 4294901760
        %1517 = vmatmul.mubr.f32.gmra.mrb[0].mxu0 %v1516
        %v1518 = vpop.f32.mrb[0].mxu0
        %v1519 = vadd.f32 %v1342, %v1518
        %v1520 = vpop.f32.mrb[0].mxu0
        %1521 = vmatprep.mubr.f32.mxu0 0.0
        %v1522 = vand.u32 %v250, 4294901760
        %1523 = vmatmul.mubr.f32.gmra.mrb[0].mxu0 %v1522
        %v1524 = vpop.f32.mrb[0].mxu0
        %v1525 = vadd.f32 %v1348, %v1524
        %v1526 = vpop.f32.mrb[0].mxu0
        %1527 = vmatprep.mubr.f32.mxu0 0.0
        %v1528 = vand.u32 %v251, 4294901760
        %1529 = vmatmul.mubr.f32.gmra.mrb[0].mxu0 %v1528
        %v1530 = vpop.f32.mrb[0].mxu0
        %v1531 = vadd.f32 %v1354, %v1530
        %v1532 = vpop.f32.mrb[0].mxu0
        %1533 = vmatprep.mubr.f32.mxu0 0.0
        %v1534 = vand.u32 %v252, 4294901760
        %1535 = vmatmul.mubr.f32.gmra.mrb[0].mxu0 %v1534
        %v1536 = vpop.f32.mrb[0].mxu0
        %v1537 = vadd.f32 %v1360, %v1536
        %v1538 = vpop.f32.mrb[0].mxu0
        %1539 = vmatprep.mubr.f32.mxu0 0.0
        %v1540 = vand.u32 %v253, 4294901760
        %1541 = vmatmul.mubr.f32.gmra.mrb[0].mxu0 %v1540
        %v1542 = vpop.f32.mrb[0].mxu0
        %v1543 = vadd.f32 %v1366, %v1542
        %v1544 = vpop.f32.mrb[0].mxu0
        %1545 = vmatprep.mubr.f32.mxu0 0.0
        %v1546 = vand.u32 %v254, 4294901760
        %1547 = vmatmul.mubr.f32.gmra.mrb[0].mxu0 %v1546
        %v1548 = vpop.f32.mrb[0].mxu0
        %v1549 = vadd.f32 %v1372, %v1548
        %v1550 = vpop.f32.mrb[0].mxu0
        %1551 = vmatprep.mubr.f32.mxu0 0.0
        %v1552 = vand.u32 %v255, 4294901760
        %1553 = vmatmul.mubr.f32.gmra.mrb[0].mxu0 %v1552
        %v1554 = vpop.f32.mrb[0].mxu0
        %v1555 = vadd.f32 %v1378, %v1554
        %v1556 = vpop.f32.mrb[0].mxu0
        %1557 = vdwg.mxu0
        %v1558 = vld [vmem:[%s202] sm:$0xff]
        %v1559 = vld [vmem:[%s202 + $0x8] sm:$0xff]
        %v1560 = vld [vmem:[%s202 + $0x10] sm:$0xff]
        %v1561 = vld [vmem:[%s202 + $0x18] sm:$0xff]
        %v1562 = vld [vmem:[%s202 + $0x20] sm:$0xff]
        %v1563 = vld [vmem:[%s202 + $0x28] sm:$0xff]
        %v1564 = vld [vmem:[%s202 + $0x30] sm:$0xff]
        %v1565 = vld [vmem:[%s202 + $0x38] sm:$0xff]
        %v1566 = vld [vmem:[%s202 + $0x40] sm:$0xff]
        %v1567 = vld [vmem:[%s202 + $0x48] sm:$0xff]
        %v1568 = vld [vmem:[%s202 + $0x50] sm:$0xff]
        %v1569 = vld [vmem:[%s202 + $0x58] sm:$0xff]
        %v1570 = vld [vmem:[%s202 + $0x60] sm:$0xff]
        %v1571 = vld [vmem:[%s202 + $0x68] sm:$0xff]
        %v1572 = vld [vmem:[%s202 + $0x70] sm:$0xff]
        %v1573 = vld [vmem:[%s202 + $0x78] sm:$0xff]
        %v1574 = vadd.f32 %v1558, %v1465
        %v1575 = vadd.f32 %v1559, %v1471
        %v1576 = vadd.f32 %v1560, %v1477
        %v1577 = vadd.f32 %v1561, %v1483
        %v1578 = vadd.f32 %v1562, %v1489
        %v1579 = vadd.f32 %v1563, %v1495
        %v1580 = vadd.f32 %v1564, %v1501
        %v1581 = vadd.f32 %v1565, %v1507
        %v1582 = vadd.f32 %v1566, %v1513
        %v1583 = vadd.f32 %v1567, %v1519
        %v1584 = vadd.f32 %v1568, %v1525
        %v1585 = vadd.f32 %v1569, %v1531
        %v1586 = vadd.f32 %v1570, %v1537
        %v1587 = vadd.f32 %v1571, %v1543
        %v1588 = vadd.f32 %v1572, %v1549
        %v1589 = vadd.f32 %v1573, %v1555
        %v1590 = vld [vmem:[%s3] sm:$0x1]
        %v1592 = vlaneseq
        %v1593 = vshrl.u32 %v1592, 7
        %v1594 = vsub.s32 0, %v1593
        %v1595 = vrot.slane %v1590, %v1594
        %v1597 = vadd.f32 %v1574, %v1595
        %v1598 = vadd.f32 %v1575, %v1595
        %v1599 = vadd.f32 %v1576, %v1595
        %v1600 = vadd.f32 %v1577, %v1595
        %v1601 = vadd.f32 %v1578, %v1595
        %v1602 = vadd.f32 %v1579, %v1595
        %v1603 = vadd.f32 %v1580, %v1595
        %v1604 = vadd.f32 %v1581, %v1595
        %v1605 = vadd.f32 %v1582, %v1595
        %v1606 = vadd.f32 %v1583, %v1595
        %v1607 = vadd.f32 %v1584, %v1595
        %v1608 = vadd.f32 %v1585, %v1595
        %v1609 = vadd.f32 %v1586, %v1595
        %v1610 = vadd.f32 %v1587, %v1595
        %v1611 = vadd.f32 %v1588, %v1595
        %v1612 = vadd.f32 %v1589, %v1595
        %1613 = vst [vmem:[%s231] sm:$0xff] %v1597
        %1614 = vst [vmem:[%s231 + $0x8] sm:$0xff] %v1598
        %1615 = vst [vmem:[%s231 + $0x10] sm:$0xff] %v1599
        %1616 = vst [vmem:[%s231 + $0x18] sm:$0xff] %v1600
        %1617 = vst [vmem:[%s231 + $0x20] sm:$0xff] %v1601
        %1618 = vst [vmem:[%s231 + $0x28] sm:$0xff] %v1602
        %1619 = vst [vmem:[%s231 + $0x30] sm:$0xff] %v1603
        %1620 = vst [vmem:[%s231 + $0x38] sm:$0xff] %v1604
        %1621 = vst [vmem:[%s231 + $0x40] sm:$0xff] %v1605
        %1622 = vst [vmem:[%s231 + $0x48] sm:$0xff] %v1606
        %1623 = vst [vmem:[%s231 + $0x50] sm:$0xff] %v1607
        %1624 = vst [vmem:[%s231 + $0x58] sm:$0xff] %v1608
        %1625 = vst [vmem:[%s231 + $0x60] sm:$0xff] %v1609
        %1626 = vst [vmem:[%s231 + $0x68] sm:$0xff] %v1610
        %1627 = vst [vmem:[%s231 + $0x70] sm:$0xff] %v1611
        %1628 = vst [vmem:[%s231 + $0x78] sm:$0xff] %v1612
        %s1629 = sand.u32 %s123, 1
        %s1630 = scalar_lea.sflag [#allocation4], %s1629
        %s1631 = sand.u32 %s123, 1
        %s1632 = smul.addr %s1631, 128
        %s1633 = scalar_lea.vmem [#allocation5], %s1632
        // Predicated region
        $region41: #{tpu_custom_call.1} parent=35 // pred_check
          %p1634 = pneg %p133
        $region42: #{tpu_custom_call.1} parent=35 // pred_check_branch
          %1636 = sbr.rel (%p1634) target = $region44
        $region43: #{tpu_custom_call.1} parent=35 // pred_region
          %s1637 = smul.u32 16, %s21
          %s1639 = ssub.s32 2048, 2048
          %1640 = vsyncadd %s1630, %s1639
          %s1641 = smul.addr %s1637, 128
          %s1642 = scalar_lea.hbm %s4, %s1641
          %s1643 = sshll.u32 %s1633, 4
          %s1644 = int_to_ptr.vmem [resolvable:$true] %s1643
          %1649 = dma.vmem_to_hbm [thread:$0]  %s1644, 2048, %s1642, %s1630, 128, 128, 8
        $region44: #{tpu_custom_call.1} parent=35 // pred_fallthru
          _
      $region36: #{tpu_custom_call.1} parent=5 // pred_fallthru
        _
      %p1650 = scmp.le.s32.totalorder 2, %s16
      // Predicated region
      $region45: #{tpu_custom_call.1} parent=5 // pred_check
        %p1651 = pneg %p1650
      $region46: #{tpu_custom_call.1} parent=5 // pred_check_branch
        %1653 = sbr.rel (%p1651) target = $region48
      $region47: #{tpu_custom_call.1} parent=5 // pred_region
        %s1654 = ssub.s32 %s16, 2
        // Predicated region
        $region49: #{tpu_custom_call.1} parent=47 // pred_check
          %p1655 = pneg %p139
        $region50: #{tpu_custom_call.1} parent=47 // pred_check_branch
          %1657 = sbr.rel (%p1655) target = $region52
        $region51: #{tpu_custom_call.1} parent=47 // pred_region
          %s1658 = sand.u32 %s124, 1
          %s1659 = scalar_lea.sflag [#allocation4], %s1658
          %s1660 = sand.u32 %s124, 1
          %s1661 = smul.addr %s1660, 128
          %s1662 = scalar_lea.vmem [#allocation5], %s1661
          %1663 = dma.done %s1659, 2048
        $region52: #{tpu_custom_call.1} parent=47 // pred_fallthru
          _
      $region48: #{tpu_custom_call.1} parent=5 // pred_fallthru
        _
    $region6: #{tpu_custom_call.1} parent=1 // loop_footer
      %s20 = sadd.s32 1, %s16
    $region7: #{tpu_custom_call.1} parent=1 // loop_footer_branch
      %15 = sbr.rel target = $region3
    $region8: #{tpu_custom_call.1} parent=1 // loop_exit
      _
    %1664 = vsyncpa [#allocation3], 1
    %s1665 = scalar_lea.sflag [#allocation3], 1
    %1666 = vsyncpa %s1665, 1
    %1667 = vsyncpa [#allocation4], 1
    %s1668 = scalar_lea.sflag [#allocation4], 1
    %1669 = vsyncpa %s1668, 1

</llo_original>
